<compile_context>
chip_gen: v7x
topology: tpu7x:2x2x1
jax: 0.10.0
libtpu: 0.0.40
codegen_flags: <defaults>
</compile_context>

<pallas_src>
import jax
import jax.numpy as jnp
from jax.experimental import pallas as pl
from jax.experimental.pallas import tpu as pltpu
import numpy as np


# ----------------------------- Pallas kernel --------------------------------
def critic_kernel(obs_ref, act_ref,
                  ws_ref, bs_ref, wa_ref, ba_ref,      # 1x1 convs (orig weights)
                  w1s_ref, w1a_ref, b1_ref,            # Linear(Ls+La, H0), split cols
                  w2t_ref, b2_ref,                     # Linear(H0, H1), pre-transposed
                  wout_ref,                            # Linear(H0*H1, 1) reshaped (1,H0,H1)
                  bout_ref,                            # scalar bias (SMEM)
                  out_ref):
    tn, cs, ls = obs_ref.shape
    _, ca, la = act_ref.shape
    h0 = ws_ref.shape[1]
    h1_dim = w2t_ref.shape[1]
    cdt = obs_ref.dtype                                 # matmul operand dtype

    # relu(conv1d_1x1(obs)) / relu(conv1d_1x1(action)): one batched MXU matmul
    # per input over the whole batch tile (linear in TN, no kron).
    ws = jnp.broadcast_to(ws_ref[...], (tn, h0, cs))
    wa = jnp.broadcast_to(wa_ref[...], (tn, h0, ca))
    xs3 = jnp.einsum("nhc,ncl->nhl", ws, obs_ref[...],
                     preferred_element_type=jnp.float32)
    xa3 = jnp.einsum("nhc,ncl->nhl", wa, act_ref[...],
                     preferred_element_type=jnp.float32)
    xs3 = jnp.maximum(xs3 + bs_ref[...], 0.0)           # (TN, H0, Ls), f32
    xa3 = jnp.maximum(xa3 + ba_ref[...], 0.0)           # (TN, H0, La), f32

    # Collapse to the row-stacked layout, rows = (sample, conv channel).
    # H0 is a sublane multiple for the real module (256), so this is layout-only.
    xs = xs3.reshape(tn * h0, ls).astype(cdt)
    xa = xa3.reshape(tn * h0, la).astype(cdt)

    # relu(Linear(Ls+La, H0)) on concat(xs, xa), expressed without the concat
    # (W1 pre-split into Ls / La column blocks).
    z1 = (jnp.dot(xs, w1s_ref[...], preferred_element_type=jnp.float32)
          + jnp.dot(xa, w1a_ref[...], preferred_element_type=jnp.float32)
          + b1_ref[...])
    a1 = jnp.maximum(z1, 0.0).astype(cdt)               # (TN*H0, H0)

    # relu(Linear(H0, H1))
    z2 = jnp.dot(a1, w2t_ref[...], preferred_element_type=jnp.float32) + b2_ref[...]
    a2 = jnp.maximum(z2, 0.0)                           # (TN*H0, H1), f32

    # Linear(H0*H1, 1) on the row-major flatten of a2:
    #   val[n] = sum_{h,k} a2[(n,h), k] * Wout[h, k] + bout
    # elementwise multiply + lane reduce + tiny ones-vector MXU contraction that
    # lands the result lane-major (no O(TN^2) operands, no odd transposes).
    p = a2.reshape(tn, h0, h1_dim) * wout_ref[...]      # (TN, H0, H1)
    r = jnp.sum(p, axis=-1)                             # (TN, H0)
    ones_h = jnp.ones((1, h0), jnp.float32)
    v = jnp.einsum("ah,nh->an", ones_h, r,
                   preferred_element_type=jnp.float32) + bout_ref[0]   # (1, TN)
    out_ref[...] = v.reshape(1, 1, tn)                  # single lane-dense store


# ------------------------------- wrappers ------------------------------------
def prepare_kernel_params(params, compute_dtype=jnp.float32):
    """One-time conversion of module parameters into kernel layout / dtypes.

    compute_dtype is the MXU operand dtype (bfloat16 recommended on v6e/v7x,
    float32 on v5e); biases, the output weight and all accumulation stay f32.
    """
    H0, Cs = params["Ws"].shape
    _, Ca = params["Wa"].shape
    H1 = params["W2t"].shape[1]
    cdt = compute_dtype
    return {
        "ws":   params["Ws"].reshape(1, H0, Cs).astype(cdt),
        "bs":   params["bs"].reshape(1, H0, 1).astype(jnp.float32),
        "wa":   params["Wa"].reshape(1, H0, Ca).astype(cdt),
        "ba":   params["ba"].reshape(1, H0, 1).astype(jnp.float32),
        "w1s":  params["W1s"].astype(cdt),
        "w1a":  params["W1a"].astype(cdt),
        "b1":   params["b1"].astype(jnp.float32),
        "w2t":  params["W2t"].astype(cdt),
        "b2":   params["b2"].astype(jnp.float32),
        "wout": params["WoutR"].reshape(1, H0, H1).astype(jnp.float32),
        "bout": params["bout"].reshape(1).astype(jnp.float32),
    }


def critic_forward(obs, action, kparams, tile_n=64):
    N, Cs, Ls = obs.shape
    _, Ca, La = action.shape
    _, H0, _ = kparams["ws"].shape
    cdt = kparams["w1s"].dtype

    # Batch tile: >= 2 grid steps whenever N >= 2 (v7x has 2 TensorCores), and
    # capped by tile_n (sweep / derive from VMEM: activations ~ TN*H0*H0*4B).
    TN = max(1, min(int(tile_n), (N + 1) // 2))
    n_tiles = -(-N // TN)
    N_pad = n_tiles * TN

    if N_pad != N:                        # zero-pad batch so it tiles evenly
        obs = jnp.pad(obs, ((0, N_pad - N), (0, 0), (0, 0)))
        action = jnp.pad(action, ((0, N_pad - N), (0, 0), (0, 0)))
    obs = obs.astype(cdt)
    action = action.astype(cdt)

    def shared(x):                        # grid-invariant full-array block
        zeros = (0,) * x.ndim
        return pl.BlockSpec(x.shape, lambda i, z=zeros: z)

    in_specs = [
        pl.BlockSpec((TN, Cs, Ls), lambda i: (i, 0, 0)),   # obs batch tile
        pl.BlockSpec((TN, Ca, La), lambda i: (i, 0, 0)),   # action batch tile
        shared(kparams["ws"]), shared(kparams["bs"]),
        shared(kparams["wa"]), shared(kparams["ba"]),
        shared(kparams["w1s"]), shared(kparams["w1a"]), shared(kparams["b1"]),
        shared(kparams["w2t"]), shared(kparams["b2"]),
        shared(kparams["wout"]),
        pl.BlockSpec(memory_space=pltpu.MemorySpace.SMEM),  # bout scalar
    ]

    out = pl.pallas_call(
        critic_kernel,
        out_shape=jax.ShapeDtypeStruct((n_tiles, 1, TN), jnp.float32),
        grid=(n_tiles,),
        in_specs=in_specs,
        out_specs=pl.BlockSpec((1, 1, TN), lambda i: (i, 0, 0)),
        compiler_params=pltpu.CompilerParams(
            dimension_semantics=("parallel",)),
    )(obs, action,
      kparams["ws"], kparams["bs"], kparams["wa"], kparams["ba"],
      kparams["w1s"], kparams["w1a"], kparams["b1"],
      kparams["w2t"], kparams["b2"],
      kparams["wout"], kparams["bout"])

    return out.reshape(N_pad, 1)[:N]


# --------------------------- pure-JAX reference -------------------------------
def critic_reference(obs, action, params):
    hp = jax.lax.Precision.HIGHEST
    xs = jax.nn.relu(jnp.einsum("hc,ncl->nhl", params["Ws"], obs, precision=hp)
                     + params["bs"][None, :, :])
    xa = jax.nn.relu(jnp.einsum("hc,ncl->nhl", params["Wa"], action, precision=hp)
                     + params["ba"][None, :, :])
    x = jnp.concatenate([xs, xa], axis=-1)                          # (N, H0, Ls+La)
    w1t = jnp.concatenate([params["W1s"], params["W1a"]], axis=0)   # (Ls+La, H0)
    h1 = jax.nn.relu(jnp.einsum("nhl,lo->nho", x, w1t, precision=hp)
                     + params["b1"][None])
    h2 = jax.nn.relu(jnp.einsum("nho,ok->nhk", h1, params["W2t"], precision=hp)
                     + params["b2"][None])
    N = obs.shape[0]
    flat = h2.reshape(N, -1)
    wout = params["WoutR"].reshape(1, -1)
    return jnp.dot(flat, wout.T, precision=hp) + params["bout"]


# ------------------------------ param setup -----------------------------------
def init_params(key, Cs, Ls, Ca, La, H0, H1):
    ks = jax.random.split(key, 10)

    def u(k, shape, lim):
        return jax.random.uniform(k, shape, jnp.float32, -lim, lim)

    lim_s = 1.0 / np.sqrt(H0)        # hidden_init uses weight.size()[0]
    lim_a = 1.0 / np.sqrt(Ca)        # PyTorch default conv init scale (k=1)
    lim_1 = 1.0 / np.sqrt(H0)
    lim_2 = 1.0 / np.sqrt(H1)

    return {
        "Ws":   u(ks[0], (H0, Cs), lim_s),      # Conv1d(Cs, H0, k=1).weight[..., 0]
        "bs":   u(ks[1], (H0, 1), lim_s),
        "Wa":   u(ks[2], (H0, Ca), lim_a),      # Conv1d(Ca, H0, k=1).weight[..., 0]
        "ba":   u(ks[3], (H0, 1), lim_a),
        # Linear(Ls+La, H0): weight (H0, Ls+La) -> pre-transposed and split
        "W1s":  u(ks[4], (Ls, H0), lim_1),
        "W1a":  u(ks[5], (La, H0), lim_1),
        "b1":   u(ks[6], (1, H0), lim_1),
        # Linear(H0, H1): weight (H1, H0) -> pre-transposed
        "W2t":  u(ks[7], (H0, H1), lim_2),
        "b2":   u(ks[8], (1, H1), lim_2),
        # Linear(H0*H1, 1): weight (1, H0*H1) -> reshaped row-major to (H0, H1)
        "WoutR": u(ks[9], (H0, H1), 0.003),
        "bout": jnp.zeros((1,), jnp.float32),
    }


if __name__ == "__main__":
    # Small shapes consistent with the module: nS=(Cs, Ls), nA=(Ca, La),
    # hidden_dims=(H0, H1).  N=5 exercises batch padding + a multi-step grid.
    N, Cs, Ls, Ca, La = 5, 4, 16, 3, 8
    H0, H1 = 32, 16

    key = jax.random.PRNGKey(0)
    k_obs, k_act, k_par = jax.random.split(key, 3)
    obs = jax.random.normal(k_obs, (N, Cs, Ls), jnp.float32)     # NCL, like PyTorch
    action = jax.random.normal(k_act, (N, Ca, La), jnp.float32)  # NCL

    params = init_params(k_par, Cs, Ls, Ca, La, H0, H1)
    ref = jax.block_until_ready(critic_reference(obs, action, params))

    # float32 matmul operands (exact; the right choice on v5e). 2 grid steps.
    kp_f32 = prepare_kernel_params(params, jnp.float32)
    out_f32 = jax.block_until_ready(critic_forward(obs, action, kp_f32))
    assert out_f32.shape == (N, 1), out_f32.shape
    np.testing.assert_allclose(np.asarray(out_f32), np.asarray(ref),
                               rtol=1e-4, atol=1e-4)

    # bfloat16 matmul operands (recommended on v6e/v7x); smaller tile -> 3 steps.
    kp_bf16 = prepare_kernel_params(params, jnp.bfloat16)
    out_bf16 = jax.block_until_ready(critic_forward(obs, action, kp_bf16, tile_n=2))
    assert out_bf16.shape == (N, 1), out_bf16.shape
    np.testing.assert_allclose(np.asarray(out_bf16), np.asarray(ref),
                               rtol=5e-2, atol=2e-2)

    print("KERNEL_OK")
</pallas_src>

<mosaic_0001>
module attributes {stable_mosaic.version = 11 : i64} {
  func.func @critic_kernel(%arg0: i32, %arg1: memref<3x4x16xf32, #tpu.memory_space<vmem>>, %arg2: memref<3x3x8xf32, #tpu.memory_space<vmem>>, %arg3: memref<1x32x4xf32, #tpu.memory_space<vmem>>, %arg4: memref<1x32x1xf32, #tpu.memory_space<vmem>>, %arg5: memref<1x32x3xf32, #tpu.memory_space<vmem>>, %arg6: memref<1x32x1xf32, #tpu.memory_space<vmem>>, %arg7: memref<16x32xf32, #tpu.memory_space<vmem>>, %arg8: memref<8x32xf32, #tpu.memory_space<vmem>>, %arg9: memref<1x32xf32, #tpu.memory_space<vmem>>, %arg10: memref<32x16xf32, #tpu.memory_space<vmem>>, %arg11: memref<1x16xf32, #tpu.memory_space<vmem>>, %arg12: memref<1x32x16xf32, #tpu.memory_space<vmem>>, %arg13: memref<1xf32, #tpu.memory_space<smem>>, %arg14: memref<1x1x3xf32, #tpu.memory_space<vmem>>) attributes {dimension_semantics = [#tpu.dimension_semantics<parallel>], iteration_bounds = array<i64: 2>, scalar_prefetch = 0 : i64, scratch_operands = 0 : i64, tpu.core_type = #tpu.core_type<tc>, window_params = [{transform_indices = @transform_0, window_bounds = array<i64: 3, 4, 16>}, {transform_indices = @transform_1, window_bounds = array<i64: 3, 3, 8>}, {pipeline_mode = #tpu.pipeline_mode<synchronous>, transform_indices = @transform_2, window_bounds = array<i64: 1, 32, 4>}, {pipeline_mode = #tpu.pipeline_mode<synchronous>, transform_indices = @transform_3, window_bounds = array<i64: 1, 32, 1>}, {pipeline_mode = #tpu.pipeline_mode<synchronous>, transform_indices = @transform_4, window_bounds = array<i64: 1, 32, 3>}, {pipeline_mode = #tpu.pipeline_mode<synchronous>, transform_indices = @transform_5, window_bounds = array<i64: 1, 32, 1>}, {pipeline_mode = #tpu.pipeline_mode<synchronous>, transform_indices = @transform_6, window_bounds = array<i64: 16, 32>}, {pipeline_mode = #tpu.pipeline_mode<synchronous>, transform_indices = @transform_7, window_bounds = array<i64: 8, 32>}, {pipeline_mode = #tpu.pipeline_mode<synchronous>, transform_indices = @transform_8, window_bounds = array<i64: 1, 32>}, {pipeline_mode = #tpu.pipeline_mode<synchronous>, transform_indices = @transform_9, window_bounds = array<i64: 32, 16>}, {pipeline_mode = #tpu.pipeline_mode<synchronous>, transform_indices = @transform_10, window_bounds = array<i64: 1, 16>}, {pipeline_mode = #tpu.pipeline_mode<synchronous>, transform_indices = @transform_11, window_bounds = array<i64: 1, 32, 16>}, {transform_indices = @transform_12, window_bounds = array<i64: 1>}, {transform_indices = @transform_13, window_bounds = array<i64: 1, 1, 3>}]} {
    %c0 = arith.constant 0 : index
    %c0_0 = arith.constant 0 : index
    %c0_1 = arith.constant 0 : index
    %0 = vector.load %arg3[%c0, %c0_0, %c0_1] : memref<1x32x4xf32, #tpu.memory_space<vmem>>, vector<1x32x4xf32>
    %1 = vector.shape_cast %0 : vector<1x32x4xf32> to vector<1x32x4xf32>
    %2 = vector.broadcast %1 : vector<1x32x4xf32> to vector<3x32x4xf32>
    %c0_2 = arith.constant 0 : index
    %c0_3 = arith.constant 0 : index
    %c0_4 = arith.constant 0 : index
    %3 = vector.load %arg5[%c0_2, %c0_3, %c0_4] : memref<1x32x3xf32, #tpu.memory_space<vmem>>, vector<1x32x3xf32>
    %4 = vector.shape_cast %3 : vector<1x32x3xf32> to vector<1x32x3xf32>
    %5 = vector.broadcast %4 : vector<1x32x3xf32> to vector<3x32x3xf32>
    %c0_5 = arith.constant 0 : index
    %c0_6 = arith.constant 0 : index
    %c0_7 = arith.constant 0 : index
    %6 = vector.load %arg1[%c0_5, %c0_6, %c0_7] : memref<3x4x16xf32, #tpu.memory_space<vmem>>, vector<3x4x16xf32>
    "tpu.trace_start"() <{level = 10 : i32, message = "nhc,ncl->nhl"}> : () -> ()
    %cst = arith.constant dense<0.000000e+00> : vector<3x32x16xf32>
    %7 = tpu.matmul %2, %6, %cst {dimension_numbers = #tpu.dot_dimension_numbers<[2], [1], [1], [2], [0, 0, 0, 1, 1, 2], [0], [0]>} : vector<3x32x4xf32>, vector<3x4x16xf32>, vector<3x32x16xf32> -> vector<3x32x16xf32>
    "tpu.trace_stop"() : () -> ()
    %c0_8 = arith.constant 0 : index
    %c0_9 = arith.constant 0 : index
    %c0_10 = arith.constant 0 : index
    %8 = vector.load %arg2[%c0_8, %c0_9, %c0_10] : memref<3x3x8xf32, #tpu.memory_space<vmem>>, vector<3x3x8xf32>
    "tpu.trace_start"() <{level = 10 : i32, message = "nhc,ncl->nhl"}> : () -> ()
    %cst_11 = arith.constant dense<0.000000e+00> : vector<3x32x8xf32>
    %9 = tpu.matmul %5, %8, %cst_11 {dimension_numbers = #tpu.dot_dimension_numbers<[2], [1], [1], [2], [0, 0, 0, 1, 1, 2], [0], [0]>} : vector<3x32x3xf32>, vector<3x3x8xf32>, vector<3x32x8xf32> -> vector<3x32x8xf32>
    "tpu.trace_stop"() : () -> ()
    %c0_12 = arith.constant 0 : index
    %c0_13 = arith.constant 0 : index
    %c0_14 = arith.constant 0 : index
    %10 = vector.load %arg4[%c0_12, %c0_13, %c0_14] : memref<1x32x1xf32, #tpu.memory_space<vmem>>, vector<1x32x1xf32>
    %11 = vector.broadcast %10 : vector<1x32x1xf32> to vector<3x32x16xf32>
    %12 = arith.addf %7, %11 : vector<3x32x16xf32>
    %cst_15 = arith.constant 0.000000e+00 : f32
    %13 = vector.broadcast %cst_15 : f32 to vector<3x32x16xf32>
    %14 = arith.maximumf %12, %13 : vector<3x32x16xf32>
    %c0_16 = arith.constant 0 : index
    %c0_17 = arith.constant 0 : index
    %c0_18 = arith.constant 0 : index
    %15 = vector.load %arg6[%c0_16, %c0_17, %c0_18] : memref<1x32x1xf32, #tpu.memory_space<vmem>>, vector<1x32x1xf32>
    %16 = vector.broadcast %15 : vector<1x32x1xf32> to vector<3x32x8xf32>
    %17 = arith.addf %9, %16 : vector<3x32x8xf32>
    %cst_19 = arith.constant 0.000000e+00 : f32
    %18 = vector.broadcast %cst_19 : f32 to vector<3x32x8xf32>
    %19 = arith.maximumf %17, %18 : vector<3x32x8xf32>
    %20 = vector.shape_cast %14 : vector<3x32x16xf32> to vector<96x16xf32>
    %21 = vector.shape_cast %19 : vector<3x32x8xf32> to vector<96x8xf32>
    %c0_20 = arith.constant 0 : index
    %c0_21 = arith.constant 0 : index
    %22 = vector.load %arg7[%c0_20, %c0_21] : memref<16x32xf32, #tpu.memory_space<vmem>>, vector<16x32xf32>
    %cst_22 = arith.constant dense<0.000000e+00> : vector<96x32xf32>
    %23 = tpu.matmul %20, %22, %cst_22 {dimension_numbers = #tpu.dot_dimension_numbers<[1], [0], [0], [1], [0, 0, 1, 1], [], []>} : vector<96x16xf32>, vector<16x32xf32>, vector<96x32xf32> -> vector<96x32xf32>
    %c0_23 = arith.constant 0 : index
    %c0_24 = arith.constant 0 : index
    %24 = vector.load %arg8[%c0_23, %c0_24] : memref<8x32xf32, #tpu.memory_space<vmem>>, vector<8x32xf32>
    %cst_25 = arith.constant dense<0.000000e+00> : vector<96x32xf32>
    %25 = tpu.matmul %21, %24, %cst_25 {dimension_numbers = #tpu.dot_dimension_numbers<[1], [0], [0], [1], [0, 0, 1, 1], [], []>} : vector<96x8xf32>, vector<8x32xf32>, vector<96x32xf32> -> vector<96x32xf32>
    %26 = arith.addf %23, %25 : vector<96x32xf32>
    %c0_26 = arith.constant 0 : index
    %c0_27 = arith.constant 0 : index
    %27 = vector.load %arg9[%c0_26, %c0_27] : memref<1x32xf32, #tpu.memory_space<vmem>>, vector<1x32xf32>
    %28 = vector.broadcast %27 : vector<1x32xf32> to vector<96x32xf32>
    %29 = arith.addf %26, %28 : vector<96x32xf32>
    %cst_28 = arith.constant 0.000000e+00 : f32
    %30 = vector.broadcast %cst_28 : f32 to vector<96x32xf32>
    %31 = arith.maximumf %29, %30 : vector<96x32xf32>
    %c0_29 = arith.constant 0 : index
    %c0_30 = arith.constant 0 : index
    %32 = vector.load %arg10[%c0_29, %c0_30] : memref<32x16xf32, #tpu.memory_space<vmem>>, vector<32x16xf32>
    %cst_31 = arith.constant dense<0.000000e+00> : vector<96x16xf32>
    %33 = tpu.matmul %31, %32, %cst_31 {dimension_numbers = #tpu.dot_dimension_numbers<[1], [0], [0], [1], [0, 0, 1, 1], [], []>} : vector<96x32xf32>, vector<32x16xf32>, vector<96x16xf32> -> vector<96x16xf32>
    %c0_32 = arith.constant 0 : index
    %c0_33 = arith.constant 0 : index
    %34 = vector.load %arg11[%c0_32, %c0_33] : memref<1x16xf32, #tpu.memory_space<vmem>>, vector<1x16xf32>
    %35 = vector.broadcast %34 : vector<1x16xf32> to vector<96x16xf32>
    %36 = arith.addf %33, %35 : vector<96x16xf32>
    %cst_34 = arith.constant 0.000000e+00 : f32
    %37 = vector.broadcast %cst_34 : f32 to vector<96x16xf32>
    %38 = arith.maximumf %36, %37 : vector<96x16xf32>
    %39 = vector.shape_cast %38 : vector<96x16xf32> to vector<3x32x16xf32>
    %c0_35 = arith.constant 0 : index
    %c0_36 = arith.constant 0 : index
    %c0_37 = arith.constant 0 : index
    %40 = vector.load %arg12[%c0_35, %c0_36, %c0_37] : memref<1x32x16xf32, #tpu.memory_space<vmem>>, vector<1x32x16xf32>
    %41 = vector.broadcast %40 : vector<1x32x16xf32> to vector<3x32x16xf32>
    %42 = arith.mulf %39, %41 : vector<3x32x16xf32>
    %cst_38 = arith.constant dense<0.000000e+00> : vector<3x32xf32>
    %43 = vector.multi_reduction <add>, %42, %cst_38 [2] : vector<3x32x16xf32> to vector<3x32xf32>
    %cst_39 = arith.constant 1.000000e+00 : f32
    %44 = vector.broadcast %cst_39 : f32 to vector<1x32xf32>
    "tpu.trace_start"() <{level = 10 : i32, message = "ah,nh->an"}> : () -> ()
    %cst_40 = arith.constant dense<0.000000e+00> : vector<1x3xf32>
    %45 = tpu.matmul %44, %43, %cst_40 {dimension_numbers = #tpu.dot_dimension_numbers<[1], [1], [0], [0], [0, 0, 1, 0], [], []>} : vector<1x32xf32>, vector<3x32xf32>, vector<1x3xf32> -> vector<1x3xf32>
    "tpu.trace_stop"() : () -> ()
    %c0_41 = arith.constant 0 : index
    %46 = memref.load %arg13[%c0_41] : memref<1xf32, #tpu.memory_space<smem>>
    %47 = vector.broadcast %46 : f32 to vector<1x3xf32>
    %48 = arith.addf %45, %47 : vector<1x3xf32>
    %49 = vector.shape_cast %48 : vector<1x3xf32> to vector<1x1x3xf32>
    %c0_42 = arith.constant 0 : index
    %c0_43 = arith.constant 0 : index
    %c0_44 = arith.constant 0 : index
    %50 = vector.load %arg14[%c0_42, %c0_43, %c0_44] : memref<1x1x3xf32, #tpu.memory_space<vmem>>, vector<1x1x3xf32>
    tpu.vector_store %arg14[%c0_42, %c0_43, %c0_44], %49 {strides = array<i32>} : memref<1x1x3xf32, #tpu.memory_space<vmem>>, vector<1x1x3xf32>,
    return
  }
  func.func @transform_0(%arg0: i32) -> (i32, i32, i32) {
    %c0_i32 = arith.constant 0 : i32
    %c0_i32_0 = arith.constant 0 : i32
    %c0_i32_1 = arith.constant 0 : i32
    return %arg0, %c0_i32, %c0_i32_0 : i32, i32, i32
  }
  func.func @transform_1(%arg0: i32) -> (i32, i32, i32) {
    %c0_i32 = arith.constant 0 : i32
    %c0_i32_0 = arith.constant 0 : i32
    %c0_i32_1 = arith.constant 0 : i32
    return %arg0, %c0_i32, %c0_i32_0 : i32, i32, i32
  }
  func.func @transform_2(%arg0: i32) -> (i32, i32, i32) {
    %c0_i32 = arith.constant 0 : i32
    %c0_i32_0 = arith.constant 0 : i32
    %c0_i32_1 = arith.constant 0 : i32
    %c0_i32_2 = arith.constant 0 : i32
    return %c0_i32, %c0_i32_0, %c0_i32_1 : i32, i32, i32
  }
  func.func @transform_3(%arg0: i32) -> (i32, i32, i32) {
    %c0_i32 = arith.constant 0 : i32
    %c0_i32_0 = arith.constant 0 : i32
    %c0_i32_1 = arith.constant 0 : i32
    %c0_i32_2 = arith.constant 0 : i32
    return %c0_i32, %c0_i32_0, %c0_i32_1 : i32, i32, i32
  }
  func.func @transform_4(%arg0: i32) -> (i32, i32, i32) {
    %c0_i32 = arith.constant 0 : i32
    %c0_i32_0 = arith.constant 0 : i32
    %c0_i32_1 = arith.constant 0 : i32
    %c0_i32_2 = arith.constant 0 : i32
    return %c0_i32, %c0_i32_0, %c0_i32_1 : i32, i32, i32
  }
  func.func @transform_5(%arg0: i32) -> (i32, i32, i32) {
    %c0_i32 = arith.constant 0 : i32
    %c0_i32_0 = arith.constant 0 : i32
    %c0_i32_1 = arith.constant 0 : i32
    %c0_i32_2 = arith.constant 0 : i32
    return %c0_i32, %c0_i32_0, %c0_i32_1 : i32, i32, i32
  }
  func.func @transform_6(%arg0: i32) -> (i32, i32) {
    %c0_i32 = arith.constant 0 : i32
    %c0_i32_0 = arith.constant 0 : i32
    %c0_i32_1 = arith.constant 0 : i32
    return %c0_i32, %c0_i32_0 : i32, i32
  }
  func.func @transform_7(%arg0: i32) -> (i32, i32) {
    %c0_i32 = arith.constant 0 : i32
    %c0_i32_0 = arith.constant 0 : i32
    %c0_i32_1 = arith.constant 0 : i32
    return %c0_i32, %c0_i32_0 : i32, i32
  }
  func.func @transform_8(%arg0: i32) -> (i32, i32) {
    %c0_i32 = arith.constant 0 : i32
    %c0_i32_0 = arith.constant 0 : i32
    %c0_i32_1 = arith.constant 0 : i32
    return %c0_i32, %c0_i32_0 : i32, i32
  }
  func.func @transform_9(%arg0: i32) -> (i32, i32) {
    %c0_i32 = arith.constant 0 : i32
    %c0_i32_0 = arith.constant 0 : i32
    %c0_i32_1 = arith.constant 0 : i32
    return %c0_i32, %c0_i32_0 : i32, i32
  }
  func.func @transform_10(%arg0: i32) -> (i32, i32) {
    %c0_i32 = arith.constant 0 : i32
    %c0_i32_0 = arith.constant 0 : i32
    %c0_i32_1 = arith.constant 0 : i32
    return %c0_i32, %c0_i32_0 : i32, i32
  }
  func.func @transform_11(%arg0: i32) -> (i32, i32, i32) {
    %c0_i32 = arith.constant 0 : i32
    %c0_i32_0 = arith.constant 0 : i32
    %c0_i32_1 = arith.constant 0 : i32
    %c0_i32_2 = arith.constant 0 : i32
    return %c0_i32, %c0_i32_0, %c0_i32_1 : i32, i32, i32
  }
  func.func @transform_12(%arg0: i32) -> i32 {
    %c0_i32 = arith.constant 0 : i32
    %c0_i32_0 = arith.constant 0 : i32
    return %c0_i32 : i32
  }
  func.func @transform_13(%arg0: i32) -> (i32, i32, i32) {
    %c0_i32 = arith.constant 0 : i32
    %c0_i32_0 = arith.constant 0 : i32
    %c0_i32_1 = arith.constant 0 : i32
    return %arg0, %c0_i32, %c0_i32_0 : i32, i32, i32
  }
}

</mosaic_0001>

<llo_original>
// kernel: tpu_custom_call.1
$region0: #{tpu_custom_call.1}
  #allocation0 [shape = 'u32[]', space=smem, size = 0x4, offset = 0x4, fixed_abs, tag = 'smem constant byte address 0x4 - core index']
  #allocation1 [shape = 'u32[144,128]{1,0:T(1,128)}', space=vmem, size = 0x12000, scoped, tag = 'internal scratch']
  #allocation2 [shape = 'f32[1]{0:T(128)S(6)}', space=smem, size = 0x200, scoped, tag = 'scoped memory for tpu_custom_call.1']
  %s0 = inlined_call_operand.vmem [shape: f32[6,4,16], index: 0, kind: input, shape index: {}]
  %s1 = inlined_call_operand.vmem [shape: f32[6,3,8], index: 1, kind: input, shape index: {}]
  %s2 = inlined_call_operand.vmem [shape: f32[1,32,4], index: 2, kind: input, shape index: {}]
  %s3 = inlined_call_operand.vmem [shape: f32[1,32,1], index: 3, kind: input, shape index: {}]
  %s4 = inlined_call_operand.vmem [shape: f32[1,32,3], index: 4, kind: input, shape index: {}]
  %s5 = inlined_call_operand.vmem [shape: f32[1,32,1], index: 5, kind: input, shape index: {}]
  %s6 = inlined_call_operand.vmem [shape: f32[16,32], index: 6, kind: input, shape index: {}]
  %s7 = inlined_call_operand.vmem [shape: f32[8,32], index: 7, kind: input, shape index: {}]
  %s8 = inlined_call_operand.vmem [shape: f32[1,32], index: 8, kind: input, shape index: {}]
  %s9 = inlined_call_operand.vmem [shape: f32[32,16], index: 9, kind: input, shape index: {}]
  %s10 = inlined_call_operand.vmem [shape: f32[1,16], index: 10, kind: input, shape index: {}]
  %s11 = inlined_call_operand.vmem [shape: f32[1,32,16], index: 11, kind: input, shape index: {}]
  %s12 = inlined_call_operand.<no memory space> [shape: f32[1], index: 12, kind: input, shape index: {}]
  %s13 = inlined_call_operand.hbm [shape: f32[2,1,3], index: 13, kind: output, shape index: {}]
  %s14 = sld [smem:[#allocation0]]
  $region85: #{tpu_custom_call.1} parent=0
    _
  %s16 = ssub.s32 1, %s14
  %s17 = scalar_select 0, %s16, %s14
  %18 = sst [smem:[#allocation2]] %s12
  $region1: #{tpu_custom_call.1} parent=0
    #allocation3 [shape = 'u8[1024]{0}', space=vmem, size = 0x400, scoped, tag = 'output window, operand 0']
    #allocation4 [shape = 's32[2]{0}', space=sflag, size = 0x8, scoped, tag = 'scoped memory for tpu_custom_call.1']
    %19 = vsyncpa [#allocation4], 0
    %s20 = scalar_lea.sflag [#allocation4], 1
    %21 = vsyncpa %s20, 0
    loop: start=0, step=1, limit=4
    $region2: #{tpu_custom_call.1} parent=1 // loop_pre_header
      _
    $region3: #{tpu_custom_call.1} parent=1 // loop_header
      %s23 = sphi 0, %s27
      %p24 = scmp.ge.s32.totalorder %s23, 4
      %s33 = sphi 0, %s35
      %s36 = sphi 0, %s33
      %s37 = sphi 0, %s36
      %s53 = sphi 0, %s37
      %s59 = sphi 0, %s61
      %s62 = sphi 0, %s59
      %s63 = sphi 0, %s62
      %s79 = sphi 0, %s63
      %s83 = sphi 0, %s83
      %s85 = sphi 0, %s83
      %s86 = sphi 0, %s85
      %s100 = sphi 0, %s86
      %s104 = sphi 0, %s104
      %s106 = sphi 0, %s104
      %s107 = sphi 0, %s106
      %s121 = sphi 0, %s107
      %s125 = sphi 0, %s125
      %s127 = sphi 0, %s125
      %s128 = sphi 0, %s127
      %s142 = sphi 0, %s128
      %s146 = sphi 0, %s146
      %s148 = sphi 0, %s146
      %s149 = sphi 0, %s148
      %s163 = sphi 0, %s149
      %s167 = sphi 0, %s167
      %s169 = sphi 0, %s167
      %s170 = sphi 0, %s169
      %s184 = sphi 0, %s170
      %s188 = sphi 0, %s188
      %s190 = sphi 0, %s188
      %s191 = sphi 0, %s190
      %s205 = sphi 0, %s191
      %s209 = sphi 0, %s209
      %s211 = sphi 0, %s209
      %s212 = sphi 0, %s211
      %s226 = sphi 0, %s212
      %s230 = sphi 0, %s230
      %s232 = sphi 0, %s230
      %s233 = sphi 0, %s232
      %s247 = sphi 0, %s233
      %s251 = sphi 0, %s251
      %s253 = sphi 0, %s251
      %s254 = sphi 0, %s253
      %s268 = sphi 0, %s254
      %s272 = sphi 0, %s272
      %s274 = sphi 0, %s272
      %s275 = sphi 0, %s274
      %s289 = sphi 0, %s275
      %s293 = sphi 0, %s293
      %s295 = sphi 0, %s293
      %s296 = sphi 0, %s295
      %s310 = sphi 0, %s296
      %s316 = sphi 0, %s318
      %s319 = sphi 0, %s316
      %s320 = sphi 0, %s319
      %s336 = sphi 0, %s320
    $region4: #{tpu_custom_call.1} parent=1 // loop_header_branch
      %26 = sbr.rel (%p24) target = $region8
    $region5: #{tpu_custom_call.1} parent=1 // loop_body
      %s28 = ssub.s32 %s23, 1
      %s29 = ssub.s32 %s23, 2
      %s30 = sadd.s32 %s23, 1
      %s31 = ssub.s32 %s23, %s30
      %p32 = scmp.eq.s32.totalorder %s31, 0
      %s34 = sadd.s32 %s33, 1
      %s35 = scalar_select %p32, %s33, %s34
      %p38 = pneg %p32
      %p39 = scmp.eq.s32.totalorder %s23, 1
      %p40 = por %p38, %p39
      %p41 = scmp.ne.s32.totalorder %s33, %s36
      %p42 = scmp.eq.s32.totalorder %s23, 0
      %p43 = por %p41, %p42
      %p44 = scmp.ne.s32.totalorder %s33, %s36
      %p45 = scmp.eq.s32.totalorder %s28, 1
      %p46 = por %p44, %p45
      %p47 = scmp.ne.s32.totalorder %s36, %s37
      %p48 = scmp.eq.s32.totalorder %s28, 0
      %p49 = por %p47, %p48
      %p50 = scmp.ne.s32.totalorder %s36, %s37
      %p51 = scmp.eq.s32.totalorder %s29, 1
      %p52 = por %p50, %p51
      %p54 = scmp.ne.s32.totalorder %s37, %s53
      %p55 = scmp.eq.s32.totalorder %s29, 0
      %p56 = por %p54, %p55
      %s57 = ssub.s32 %s23, %s30
      %p58 = scmp.eq.s32.totalorder %s57, 0
      %s60 = sadd.s32 %s59, 1
      %s61 = scalar_select %p58, %s59, %s60
      %p64 = pneg %p58
      %p65 = scmp.eq.s32.totalorder %s23, 1
      %p66 = por %p64, %p65
      %p67 = scmp.ne.s32.totalorder %s59, %s62
      %p68 = scmp.eq.s32.totalorder %s23, 0
      %p69 = por %p67, %p68
      %p70 = scmp.ne.s32.totalorder %s59, %s62
      %p71 = scmp.eq.s32.totalorder %s28, 1
      %p72 = por %p70, %p71
      %p73 = scmp.ne.s32.totalorder %s62, %s63
      %p74 = scmp.eq.s32.totalorder %s28, 0
      %p75 = por %p73, %p74
      %p76 = scmp.ne.s32.totalorder %s62, %s63
      %p77 = scmp.eq.s32.totalorder %s29, 1
      %p78 = por %p76, %p77
      %p80 = scmp.ne.s32.totalorder %s63, %s79
      %p81 = scmp.eq.s32.totalorder %s29, 0
      %p82 = por %p80, %p81
      %s84 = sadd.s32 %s83, 1
      %p87 = scmp.eq.s32.totalorder %s23, 1
      %p88 = scmp.ne.s32.totalorder %s83, %s85
      %p89 = scmp.eq.s32.totalorder %s23, 0
      %p90 = por %p88, %p89
      %p91 = scmp.ne.s32.totalorder %s83, %s85
      %p92 = scmp.eq.s32.totalorder %s28, 1
      %p93 = por %p91, %p92
      %p94 = scmp.ne.s32.totalorder %s85, %s86
      %p95 = scmp.eq.s32.totalorder %s28, 0
      %p96 = por %p94, %p95
      %p97 = scmp.ne.s32.totalorder %s85, %s86
      %p98 = scmp.eq.s32.totalorder %s29, 1
      %p99 = por %p97, %p98
      %p101 = scmp.ne.s32.totalorder %s86, %s100
      %p102 = scmp.eq.s32.totalorder %s29, 0
      %p103 = por %p101, %p102
      %s105 = sadd.s32 %s104, 1
      %p108 = scmp.eq.s32.totalorder %s23, 1
      %p109 = scmp.ne.s32.totalorder %s104, %s106
      %p110 = scmp.eq.s32.totalorder %s23, 0
      %p111 = por %p109, %p110
      %p112 = scmp.ne.s32.totalorder %s104, %s106
      %p113 = scmp.eq.s32.totalorder %s28, 1
      %p114 = por %p112, %p113
      %p115 = scmp.ne.s32.totalorder %s106, %s107
      %p116 = scmp.eq.s32.totalorder %s28, 0
      %p117 = por %p115, %p116
      %p118 = scmp.ne.s32.totalorder %s106, %s107
      %p119 = scmp.eq.s32.totalorder %s29, 1
      %p120 = por %p118, %p119
      %p122 = scmp.ne.s32.totalorder %s107, %s121
      %p123 = scmp.eq.s32.totalorder %s29, 0
      %p124 = por %p122, %p123
      %s126 = sadd.s32 %s125, 1
      %p129 = scmp.eq.s32.totalorder %s23, 1
      %p130 = scmp.ne.s32.totalorder %s125, %s127
      %p131 = scmp.eq.s32.totalorder %s23, 0
      %p132 = por %p130, %p131
      %p133 = scmp.ne.s32.totalorder %s125, %s127
      %p134 = scmp.eq.s32.totalorder %s28, 1
      %p135 = por %p133, %p134
      %p136 = scmp.ne.s32.totalorder %s127, %s128
      %p137 = scmp.eq.s32.totalorder %s28, 0
      %p138 = por %p136, %p137
      %p139 = scmp.ne.s32.totalorder %s127, %s128
      %p140 = scmp.eq.s32.totalorder %s29, 1
      %p141 = por %p139, %p140
      %p143 = scmp.ne.s32.totalorder %s128, %s142
      %p144 = scmp.eq.s32.totalorder %s29, 0
      %p145 = por %p143, %p144
      %s147 = sadd.s32 %s146, 1
      %p150 = scmp.eq.s32.totalorder %s23, 1
      %p151 = scmp.ne.s32.totalorder %s146, %s148
      %p152 = scmp.eq.s32.totalorder %s23, 0
      %p153 = por %p151, %p152
      %p154 = scmp.ne.s32.totalorder %s146, %s148
      %p155 = scmp.eq.s32.totalorder %s28, 1
      %p156 = por %p154, %p155
      %p157 = scmp.ne.s32.totalorder %s148, %s149
      %p158 = scmp.eq.s32.totalorder %s28, 0
      %p159 = por %p157, %p158
      %p160 = scmp.ne.s32.totalorder %s148, %s149
      %p161 = scmp.eq.s32.totalorder %s29, 1
      %p162 = por %p160, %p161
      %p164 = scmp.ne.s32.totalorder %s149, %s163
      %p165 = scmp.eq.s32.totalorder %s29, 0
      %p166 = por %p164, %p165
      %s168 = sadd.s32 %s167, 1
      %p171 = scmp.eq.s32.totalorder %s23, 1
      %p172 = scmp.ne.s32.totalorder %s167, %s169
      %p173 = scmp.eq.s32.totalorder %s23, 0
      %p174 = por %p172, %p173
      %p175 = scmp.ne.s32.totalorder %s167, %s169
      %p176 = scmp.eq.s32.totalorder %s28, 1
      %p177 = por %p175, %p176
      %p178 = scmp.ne.s32.totalorder %s169, %s170
      %p179 = scmp.eq.s32.totalorder %s28, 0
      %p180 = por %p178, %p179
      %p181 = scmp.ne.s32.totalorder %s169, %s170
      %p182 = scmp.eq.s32.totalorder %s29, 1
      %p183 = por %p181, %p182
      %p185 = scmp.ne.s32.totalorder %s170, %s184
      %p186 = scmp.eq.s32.totalorder %s29, 0
      %p187 = por %p185, %p186
      %s189 = sadd.s32 %s188, 1
      %p192 = scmp.eq.s32.totalorder %s23, 1
      %p193 = scmp.ne.s32.totalorder %s188, %s190
      %p194 = scmp.eq.s32.totalorder %s23, 0
      %p195 = por %p193, %p194
      %p196 = scmp.ne.s32.totalorder %s188, %s190
      %p197 = scmp.eq.s32.totalorder %s28, 1
      %p198 = por %p196, %p197
      %p199 = scmp.ne.s32.totalorder %s190, %s191
      %p200 = scmp.eq.s32.totalorder %s28, 0
      %p201 = por %p199, %p200
      %p202 = scmp.ne.s32.totalorder %s190, %s191
      %p203 = scmp.eq.s32.totalorder %s29, 1
      %p204 = por %p202, %p203
      %p206 = scmp.ne.s32.totalorder %s191, %s205
      %p207 = scmp.eq.s32.totalorder %s29, 0
      %p208 = por %p206, %p207
      %s210 = sadd.s32 %s209, 1
      %p213 = scmp.eq.s32.totalorder %s23, 1
      %p214 = scmp.ne.s32.totalorder %s209, %s211
      %p215 = scmp.eq.s32.totalorder %s23, 0
      %p216 = por %p214, %p215
      %p217 = scmp.ne.s32.totalorder %s209, %s211
      %p218 = scmp.eq.s32.totalorder %s28, 1
      %p219 = por %p217, %p218
      %p220 = scmp.ne.s32.totalorder %s211, %s212
      %p221 = scmp.eq.s32.totalorder %s28, 0
      %p222 = por %p220, %p221
      %p223 = scmp.ne.s32.totalorder %s211, %s212
      %p224 = scmp.eq.s32.totalorder %s29, 1
      %p225 = por %p223, %p224
      %p227 = scmp.ne.s32.totalorder %s212, %s226
      %p228 = scmp.eq.s32.totalorder %s29, 0
      %p229 = por %p227, %p228
      %s231 = sadd.s32 %s230, 1
      %p234 = scmp.eq.s32.totalorder %s23, 1
      %p235 = scmp.ne.s32.totalorder %s230, %s232
      %p236 = scmp.eq.s32.totalorder %s23, 0
      %p237 = por %p235, %p236
      %p238 = scmp.ne.s32.totalorder %s230, %s232
      %p239 = scmp.eq.s32.totalorder %s28, 1
      %p240 = por %p238, %p239
      %p241 = scmp.ne.s32.totalorder %s232, %s233
      %p242 = scmp.eq.s32.totalorder %s28, 0
      %p243 = por %p241, %p242
      %p244 = scmp.ne.s32.totalorder %s232, %s233
      %p245 = scmp.eq.s32.totalorder %s29, 1
      %p246 = por %p244, %p245
      %p248 = scmp.ne.s32.totalorder %s233, %s247
      %p249 = scmp.eq.s32.totalorder %s29, 0
      %p250 = por %p248, %p249
      %s252 = sadd.s32 %s251, 1
      %p255 = scmp.eq.s32.totalorder %s23, 1
      %p256 = scmp.ne.s32.totalorder %s251, %s253
      %p257 = scmp.eq.s32.totalorder %s23, 0
      %p258 = por %p256, %p257
      %p259 = scmp.ne.s32.totalorder %s251, %s253
      %p260 = scmp.eq.s32.totalorder %s28, 1
      %p261 = por %p259, %p260
      %p262 = scmp.ne.s32.totalorder %s253, %s254
      %p263 = scmp.eq.s32.totalorder %s28, 0
      %p264 = por %p262, %p263
      %p265 = scmp.ne.s32.totalorder %s253, %s254
      %p266 = scmp.eq.s32.totalorder %s29, 1
      %p267 = por %p265, %p266
      %p269 = scmp.ne.s32.totalorder %s254, %s268
      %p270 = scmp.eq.s32.totalorder %s29, 0
      %p271 = por %p269, %p270
      %s273 = sadd.s32 %s272, 1
      %p276 = scmp.eq.s32.totalorder %s23, 1
      %p277 = scmp.ne.s32.totalorder %s272, %s274
      %p278 = scmp.eq.s32.totalorder %s23, 0
      %p279 = por %p277, %p278
      %p280 = scmp.ne.s32.totalorder %s272, %s274
      %p281 = scmp.eq.s32.totalorder %s28, 1
      %p282 = por %p280, %p281
      %p283 = scmp.ne.s32.totalorder %s274, %s275
      %p284 = scmp.eq.s32.totalorder %s28, 0
      %p285 = por %p283, %p284
      %p286 = scmp.ne.s32.totalorder %s274, %s275
      %p287 = scmp.eq.s32.totalorder %s29, 1
      %p288 = por %p286, %p287
      %p290 = scmp.ne.s32.totalorder %s275, %s289
      %p291 = scmp.eq.s32.totalorder %s29, 0
      %p292 = por %p290, %p291
      %s294 = sadd.s32 %s293, 1
      %p297 = scmp.eq.s32.totalorder %s23, 1
      %p298 = scmp.ne.s32.totalorder %s293, %s295
      %p299 = scmp.eq.s32.totalorder %s23, 0
      %p300 = por %p298, %p299
      %p301 = scmp.ne.s32.totalorder %s293, %s295
      %p302 = scmp.eq.s32.totalorder %s28, 1
      %p303 = por %p301, %p302
      %p304 = scmp.ne.s32.totalorder %s295, %s296
      %p305 = scmp.eq.s32.totalorder %s28, 0
      %p306 = por %p304, %p305
      %p307 = scmp.ne.s32.totalorder %s295, %s296
      %p308 = scmp.eq.s32.totalorder %s29, 1
      %p309 = por %p307, %p308
      %p311 = scmp.ne.s32.totalorder %s296, %s310
      %p312 = scmp.eq.s32.totalorder %s29, 0
      %p313 = por %p311, %p312
      %s314 = ssub.s32 %s23, %s30
      %p315 = scmp.eq.s32.totalorder %s314, 0
      %s317 = sadd.s32 %s316, 1
      %s318 = scalar_select %p315, %s316, %s317
      %p321 = pneg %p315
      %p322 = scmp.eq.s32.totalorder %s23, 1
      %p323 = por %p321, %p322
      %p324 = scmp.ne.s32.totalorder %s316, %s319
      %p325 = scmp.eq.s32.totalorder %s23, 0
      %p326 = por %p324, %p325
      %p327 = scmp.ne.s32.totalorder %s316, %s319
      %p328 = scmp.eq.s32.totalorder %s28, 1
      %p329 = por %p327, %p328
      %p330 = scmp.ne.s32.totalorder %s319, %s320
      %p331 = scmp.eq.s32.totalorder %s28, 0
      %p332 = por %p330, %p331
      %p333 = scmp.ne.s32.totalorder %s319, %s320
      %p334 = scmp.eq.s32.totalorder %s29, 1
      %p335 = por %p333, %p334
      %p337 = scmp.ne.s32.totalorder %s320, %s336
      %p338 = scmp.eq.s32.totalorder %s29, 0
      %p339 = por %p337, %p338
      %p340 = scmp.le.s32.totalorder 1, %s23
      %p341 = scmp.lt.s32.totalorder %s23, 3
      %p342 = pnand %p340, %p341
      %p343 = pneg %p342
      // Predicated region
      $region9: #{tpu_custom_call.1} parent=5 // pred_check
        _
      $region10: #{tpu_custom_call.1} parent=5 // pred_check_branch
        %345 = sbr.rel (%p342) target = $region12
      $region11: #{tpu_custom_call.1} parent=5 // pred_region
        %s346 = ssub.s32 %s23, 1
        // Predicated region
        $region13: #{tpu_custom_call.1} parent=11 // pred_check
          %p347 = pneg %p96
        $region14: #{tpu_custom_call.1} parent=11 // pred_check_branch
          %349 = sbr.rel (%p347) target = $region16
        $region15: #{tpu_custom_call.1} parent=11 // pred_region
          _
        $region16: #{tpu_custom_call.1} parent=11 // pred_fallthru
          _
        // Predicated region
        $region17: #{tpu_custom_call.1} parent=11 // pred_check
          %p350 = pneg %p117
        $region18: #{tpu_custom_call.1} parent=11 // pred_check_branch
          %352 = sbr.rel (%p350) target = $region20
        $region19: #{tpu_custom_call.1} parent=11 // pred_region
          _
        $region20: #{tpu_custom_call.1} parent=11 // pred_fallthru
          _
        // Predicated region
        $region21: #{tpu_custom_call.1} parent=11 // pred_check
          %p353 = pneg %p138
        $region22: #{tpu_custom_call.1} parent=11 // pred_check_branch
          %355 = sbr.rel (%p353) target = $region24
        $region23: #{tpu_custom_call.1} parent=11 // pred_region
          _
        $region24: #{tpu_custom_call.1} parent=11 // pred_fallthru
          _
        // Predicated region
        $region25: #{tpu_custom_call.1} parent=11 // pred_check
          %p356 = pneg %p159
        $region26: #{tpu_custom_call.1} parent=11 // pred_check_branch
          %358 = sbr.rel (%p356) target = $region28
        $region27: #{tpu_custom_call.1} parent=11 // pred_region
          _
        $region28: #{tpu_custom_call.1} parent=11 // pred_fallthru
          _
        // Predicated region
        $region29: #{tpu_custom_call.1} parent=11 // pred_check
          %p359 = pneg %p180
        $region30: #{tpu_custom_call.1} parent=11 // pred_check_branch
          %361 = sbr.rel (%p359) target = $region32
        $region31: #{tpu_custom_call.1} parent=11 // pred_region
          _
        $region32: #{tpu_custom_call.1} parent=11 // pred_fallthru
          _
        // Predicated region
        $region33: #{tpu_custom_call.1} parent=11 // pred_check
          %p362 = pneg %p201
        $region34: #{tpu_custom_call.1} parent=11 // pred_check_branch
          %364 = sbr.rel (%p362) target = $region36
        $region35: #{tpu_custom_call.1} parent=11 // pred_region
          _
        $region36: #{tpu_custom_call.1} parent=11 // pred_fallthru
          _
        // Predicated region
        $region37: #{tpu_custom_call.1} parent=11 // pred_check
          %p365 = pneg %p222
        $region38: #{tpu_custom_call.1} parent=11 // pred_check_branch
          %367 = sbr.rel (%p365) target = $region40
        $region39: #{tpu_custom_call.1} parent=11 // pred_region
          _
        $region40: #{tpu_custom_call.1} parent=11 // pred_fallthru
          _
        // Predicated region
        $region41: #{tpu_custom_call.1} parent=11 // pred_check
          %p368 = pneg %p243
        $region42: #{tpu_custom_call.1} parent=11 // pred_check_branch
          %370 = sbr.rel (%p368) target = $region44
        $region43: #{tpu_custom_call.1} parent=11 // pred_region
          _
        $region44: #{tpu_custom_call.1} parent=11 // pred_fallthru
          _
        // Predicated region
        $region45: #{tpu_custom_call.1} parent=11 // pred_check
          %p371 = pneg %p264
        $region46: #{tpu_custom_call.1} parent=11 // pred_check_branch
          %373 = sbr.rel (%p371) target = $region48
        $region47: #{tpu_custom_call.1} parent=11 // pred_region
          _
        $region48: #{tpu_custom_call.1} parent=11 // pred_fallthru
          _
        // Predicated region
        $region49: #{tpu_custom_call.1} parent=11 // pred_check
          %p374 = pneg %p285
        $region50: #{tpu_custom_call.1} parent=11 // pred_check_branch
          %376 = sbr.rel (%p374) target = $region52
        $region51: #{tpu_custom_call.1} parent=11 // pred_region
          _
        $region52: #{tpu_custom_call.1} parent=11 // pred_fallthru
          _
        // Predicated region
        $region53: #{tpu_custom_call.1} parent=11 // pred_check
          %p377 = pneg %p306
        $region54: #{tpu_custom_call.1} parent=11 // pred_check_branch
          %379 = sbr.rel (%p377) target = $region56
        $region55: #{tpu_custom_call.1} parent=11 // pred_region
          _
        $region56: #{tpu_custom_call.1} parent=11 // pred_fallthru
          _
      $region12: #{tpu_custom_call.1} parent=5 // pred_fallthru
        _
      %p380 = scmp.lt.s32.totalorder %s23, 2
      // Predicated region
      $region57: #{tpu_custom_call.1} parent=5 // pred_check
        %p381 = pneg %p380
      $region58: #{tpu_custom_call.1} parent=5 // pred_check_branch
        %383 = sbr.rel (%p381) target = $region60
      $region59: #{tpu_custom_call.1} parent=5 // pred_region
        // Predicated region
        $region61: #{tpu_custom_call.1} parent=59 // pred_check
          %p384 = pneg %p43
        $region62: #{tpu_custom_call.1} parent=59 // pred_check_branch
          %386 = sbr.rel (%p384) target = $region64
        $region63: #{tpu_custom_call.1} parent=59 // pred_region
          %s387 = smul.u32 3, %s23
          %p388 = scmp.lt.s32.totalorder %s387, 5
          %s389 = scalar_select %p388, %s387, 5
          %s390 = smul.addr %s389, 4
          %s391 = scalar_lea.vmem %s0, %s390
          %s392 = smul.u32 3, %s23
        $region64: #{tpu_custom_call.1} parent=59 // pred_fallthru
          _
        // Predicated region
        $region65: #{tpu_custom_call.1} parent=59 // pred_check
          %p393 = pneg %p69
        $region66: #{tpu_custom_call.1} parent=59 // pred_check_branch
          %395 = sbr.rel (%p393) target = $region68
        $region67: #{tpu_custom_call.1} parent=59 // pred_region
          %s396 = smul.u32 3, %s23
          %p397 = scmp.lt.s32.totalorder %s396, 5
          %s398 = scalar_select %p397, %s396, 5
          %s399 = smul.addr %s398, 4
          %s400 = scalar_lea.vmem %s1, %s399
          %s401 = smul.u32 3, %s23
        $region68: #{tpu_custom_call.1} parent=59 // pred_fallthru
          _
      $region60: #{tpu_custom_call.1} parent=5 // pred_fallthru
        _
      %p402 = scmp.le.s32.totalorder 1, %s23
      %p403 = scmp.lt.s32.totalorder %s23, 3
      %p404 = pnand %p402, %p403
      %p405 = pneg %p404
      // Predicated region
      $region69: #{tpu_custom_call.1} parent=5 // pred_check
        _
      $region70: #{tpu_custom_call.1} parent=5 // pred_check_branch
        %407 = sbr.rel (%p404) target = $region72
      $region71: #{tpu_custom_call.1} parent=5 // pred_region
        %s408 = ssub.s32 %s23, 1
        %s409 = smul.u32 3, %s28
        %p410 = scmp.lt.s32.totalorder %s409, 5
        %s411 = scalar_select %p410, %s409, 5
        %s412 = smul.addr %s411, 4
        %s413 = scalar_lea.vmem %s0, %s412
        %p414 = pneg %p49
        %p415 = pneg %p46
        %s416 = smul.u32 3, %s28
        %p417 = scmp.lt.s32.totalorder %s416, 5
        %s418 = scalar_select %p417, %s416, 5
        %s419 = smul.addr %s418, 4
        %s420 = scalar_lea.vmem %s1, %s419
        %p421 = pneg %p75
        %p422 = pneg %p72
        %p423 = pneg %p96
        %p424 = pneg %p93
        %p425 = pneg %p117
        %p426 = pneg %p114
        %p427 = pneg %p138
        %p428 = pneg %p135
        %p429 = pneg %p159
        %p430 = pneg %p156
        %p431 = pneg %p180
        %p432 = pneg %p177
        %p433 = pneg %p201
        %p434 = pneg %p198
        %p435 = pneg %p222
        %p436 = pneg %p219
        %p437 = pneg %p243
        %p438 = pneg %p240
        %p439 = pneg %p264
        %p440 = pneg %p261
        %p441 = pneg %p285
        %p442 = pneg %p282
        %p443 = pneg %p306
        %p444 = pneg %p303
        %p445 = pneg %p332
        %p446 = pneg %p329
        %s447 = sand.u32 %s319, 1
        %s448 = scalar_lea.sflag [#allocation4], %s447
        %s449 = sand.u32 %s319, 1
        %s450 = scalar_lea.vmem [#allocation3], %s449
        %s451 = smul.u32 3, %s28
        %p452 = scmp.lt.s32.totalorder %s451, 5
        %s453 = scalar_select %p452, %s451, 5
        %s454 = smul.addr %s453, 4
        %s455 = scalar_lea.vmem %s0, %s454
        %s456 = smul.u32 3, %s28
        %s457 = smul.u32 3, %s28
        %p458 = scmp.lt.s32.totalorder %s457, 5
        %s459 = scalar_select %p458, %s457, 5
        %s460 = smul.addr %s459, 4
        %s461 = scalar_lea.vmem %s1, %s460
        %s462 = smul.u32 3, %s28
        %v463 = vld [vmem:[%s2] sm:$0xff]
        %v464 = vld [vmem:[%s2 + $0x8] sm:$0xff]
        %v465 = vld [vmem:[%s2 + $0x10] sm:$0xff]
        %v466 = vld [vmem:[%s2 + $0x18] sm:$0xff]
        %v467 = vld [vmem:[%s4] sm:$0xff]
        %v468 = vld [vmem:[%s4 + $0x8] sm:$0xff]
        %v469 = vld [vmem:[%s4 + $0x10] sm:$0xff]
        %v470 = vld [vmem:[%s4 + $0x18] sm:$0xff]
        %v471 = vld [vmem:[%s455] sm:$0xf]
        %v472 = vld [vmem:[%s455 + $0x4] sm:$0xf]
        %v473 = vld [vmem:[%s455 + $0x8] sm:$0xf]
        %v474 = vld [vmem:[%s461] sm:$0x7]
        %v475 = vld [vmem:[%s461 + $0x4] sm:$0x7]
        %v476 = vld [vmem:[%s461 + $0x8] sm:$0x7]
        %v477 = vld [vmem:[%s3] sm:$0xff]
        %v478 = vld [vmem:[%s3 + $0x8] sm:$0xff]
        %v479 = vld [vmem:[%s3 + $0x10] sm:$0xff]
        %v480 = vld [vmem:[%s3 + $0x18] sm:$0xff]
        %482 = vset.pattern.permute.xlu0 0
        %483 = vperm.xlu0 %482, %v477
        %v484 = vpop.permute.xlu0 %483
        %487 = vset.pattern.permute.xlu0 0
        %488 = vperm.xlu0 %487, %v478
        %v489 = vpop.permute.xlu0 %488
        %492 = vset.pattern.permute.xlu0 0
        %493 = vperm.xlu0 %492, %v479
        %v494 = vpop.permute.xlu0 %493
        %497 = vset.pattern.permute.xlu0 0
        %498 = vperm.xlu0 %497, %v480
        %v499 = vpop.permute.xlu0 %498
        %vm501 = vcmask 31744
        %v503 = vsel %vm501, %v463, 0
        %v506 = vsel %vm501, %v464, 0
        %v509 = vsel %vm501, %v465, 0
        %v512 = vsel %vm501, %v466, 0
        %vm514 = vcmask 1043456
        %v516 = vsel %vm514, %v471, 0
        %518 = vmatprep.subr.mxu0 0.0
        %519 = vmatpush1.msra.mxu0 %v516
        %520 = vmatprep.subr.mxu0 0.0
        %521 = vmatpush1.msra.mxu0 0.0
        %522 = vmatprep.subr.mxu0 0.0
        %523 = vmatpush1.msra.mxu0 0.0
        %524 = vmatprep.subr.mxu0 0.0
        %525 = vmatpush1.msra.mxu0 0.0
        %526 = vmatprep.subr.mxu0 0.0
        %527 = vmatpush1.msra.mxu0 0.0
        %528 = vmatprep.subr.mxu0 0.0
        %529 = vmatpush1.msra.mxu0 0.0
        %530 = vmatprep.subr.mxu0 0.0
        %531 = vmatpush1.msra.mxu0 0.0
        %532 = vmatprep.subr.mxu0 0.0
        %533 = vmatpush1.msra.mxu0 0.0
        %534 = vmatprep.subr.mxu0 0.0
        %535 = vmatpush1.msra.mxu0 0.0
        %536 = vmatprep.subr.mxu0 0.0
        %537 = vmatpush1.msra.mxu0 0.0
        %538 = vmatprep.subr.mxu0 0.0
        %539 = vmatpush1.msra.mxu0 0.0
        %540 = vmatprep.subr.mxu0 0.0
        %541 = vmatpush1.msra.mxu0 0.0
        %542 = vmatprep.subr.mxu0 0.0
        %543 = vmatpush1.msra.mxu0 0.0
        %544 = vmatprep.subr.mxu0 0.0
        %545 = vmatpush1.msra.mxu0 0.0
        %546 = vmatprep.subr.mxu0 0.0
        %547 = vmatpush1.msra.mxu0 0.0
        %548 = vmatprep.subr.mxu0 0.0
        %549 = vmatpush1.msra.mxu0 0.0
        %550 = vmatprep.subr.mxu0 0.0
        %551 = vmatpush1.msra.mxu0 0.0
        %552 = vmatprep.subr.mxu0 0.0
        %553 = vmatpush1.msra.mxu0 0.0
        %554 = vmatprep.subr.mxu0 0.0
        %555 = vmatpush1.msra.mxu0 0.0
        %556 = vmatprep.subr.mxu0 0.0
        %557 = vmatpush1.msra.mxu0 0.0
        %558 = vmatprep.subr.mxu0 0.0
        %559 = vmatpush1.msra.mxu0 0.0
        %560 = vmatprep.subr.mxu0 0.0
        %561 = vmatpush1.msra.mxu0 0.0
        %562 = vmatprep.subr.mxu0 0.0
        %563 = vmatpush1.msra.mxu0 0.0
        %564 = vmatprep.subr.mxu0 0.0
        %565 = vmatpush1.msra.mxu0 0.0
        %566 = vmatprep.subr.mxu0 0.0
        %567 = vmatpush1.msra.mxu0 0.0
        %568 = vmatprep.subr.mxu0 0.0
        %569 = vmatpush1.msra.mxu0 0.0
        %570 = vmatprep.subr.mxu0 0.0
        %571 = vmatpush1.msra.mxu0 0.0
        %572 = vmatprep.subr.mxu0 0.0
        %573 = vmatpush1.msra.mxu0 0.0
        %574 = vmatprep.subr.mxu0 0.0
        %575 = vmatpush1.msra.mxu0 0.0
        %576 = vmatprep.subr.mxu0 0.0
        %577 = vmatpush1.msra.mxu0 0.0
        %578 = vmatprep.subr.mxu0 0.0
        %579 = vmatpush1.msra.mxu0 0.0
        %580 = vmatprep.subr.mxu0 0.0
        %581 = vmatpush1.msra.mxu0 0.0
        %582 = vmatprep.mubr.f32.mxu0 0.0
        %583 = vmatmul.mubr.f32.gmra.mrb[0].mxu0 %v503
        %v584 = vpop.f32.mrb[0].mxu0
        %v585 = vadd.f32 %v484, %v584
        %v586 = vpop.f32.mrb[0].mxu0
        %587 = vmatprep.mubr.f32.mxu0 0.0
        %588 = vmatmul.mubr.f32.gmra.mrb[0].mxu0 %v506
        %v589 = vpop.f32.mrb[0].mxu0
        %v590 = vadd.f32 %v489, %v589
        %v591 = vpop.f32.mrb[0].mxu0
        %592 = vmatprep.mubr.f32.mxu0 0.0
        %593 = vmatmul.mubr.f32.gmra.mrb[0].mxu0 %v509
        %v594 = vpop.f32.mrb[0].mxu0
        %v595 = vadd.f32 %v494, %v594
        %v596 = vpop.f32.mrb[0].mxu0
        %597 = vmatprep.mubr.f32.mxu0 0.0
        %598 = vmatmul.mubr.f32.gmra.mrb[0].mxu0 %v512
        %v599 = vpop.f32.mrb[0].mxu0
        %v600 = vadd.f32 %v499, %v599
        %v601 = vpop.f32.mrb[0].mxu0
        %602 = vdwg.mxu0
        %v604 = vsel %vm514, %v472, 0
        %606 = vmatprep.subr.mxu0 0.0
        %607 = vmatpush1.msra.mxu0 %v604
        %608 = vmatprep.subr.mxu0 0.0
        %609 = vmatpush1.msra.mxu0 0.0
        %610 = vmatprep.subr.mxu0 0.0
        %611 = vmatpush1.msra.mxu0 0.0
        %612 = vmatprep.subr.mxu0 0.0
        %613 = vmatpush1.msra.mxu0 0.0
        %614 = vmatprep.subr.mxu0 0.0
        %615 = vmatpush1.msra.mxu0 0.0
        %616 = vmatprep.subr.mxu0 0.0
        %617 = vmatpush1.msra.mxu0 0.0
        %618 = vmatprep.subr.mxu0 0.0
        %619 = vmatpush1.msra.mxu0 0.0
        %620 = vmatprep.subr.mxu0 0.0
        %621 = vmatpush1.msra.mxu0 0.0
        %622 = vmatprep.subr.mxu0 0.0
        %623 = vmatpush1.msra.mxu0 0.0
        %624 = vmatprep.subr.mxu0 0.0
        %625 = vmatpush1.msra.mxu0 0.0
        %626 = vmatprep.subr.mxu0 0.0
        %627 = vmatpush1.msra.mxu0 0.0
        %628 = vmatprep.subr.mxu0 0.0
        %629 = vmatpush1.msra.mxu0 0.0
        %630 = vmatprep.subr.mxu0 0.0
        %631 = vmatpush1.msra.mxu0 0.0
        %632 = vmatprep.subr.mxu0 0.0
        %633 = vmatpush1.msra.mxu0 0.0
        %634 = vmatprep.subr.mxu0 0.0
        %635 = vmatpush1.msra.mxu0 0.0
        %636 = vmatprep.subr.mxu0 0.0
        %637 = vmatpush1.msra.mxu0 0.0
        %638 = vmatprep.subr.mxu0 0.0
        %639 = vmatpush1.msra.mxu0 0.0
        %640 = vmatprep.subr.mxu0 0.0
        %641 = vmatpush1.msra.mxu0 0.0
        %642 = vmatprep.subr.mxu0 0.0
        %643 = vmatpush1.msra.mxu0 0.0
        %644 = vmatprep.subr.mxu0 0.0
        %645 = vmatpush1.msra.mxu0 0.0
        %646 = vmatprep.subr.mxu0 0.0
        %647 = vmatpush1.msra.mxu0 0.0
        %648 = vmatprep.subr.mxu0 0.0
        %649 = vmatpush1.msra.mxu0 0.0
        %650 = vmatprep.subr.mxu0 0.0
        %651 = vmatpush1.msra.mxu0 0.0
        %652 = vmatprep.subr.mxu0 0.0
        %653 = vmatpush1.msra.mxu0 0.0
        %654 = vmatprep.subr.mxu0 0.0
        %655 = vmatpush1.msra.mxu0 0.0
        %656 = vmatprep.subr.mxu0 0.0
        %657 = vmatpush1.msra.mxu0 0.0
        %658 = vmatprep.subr.mxu0 0.0
        %659 = vmatpush1.msra.mxu0 0.0
        %660 = vmatprep.subr.mxu0 0.0
        %661 = vmatpush1.msra.mxu0 0.0
        %662 = vmatprep.subr.mxu0 0.0
        %663 = vmatpush1.msra.mxu0 0.0
        %664 = vmatprep.subr.mxu0 0.0
        %665 = vmatpush1.msra.mxu0 0.0
        %666 = vmatprep.subr.mxu0 0.0
        %667 = vmatpush1.msra.mxu0 0.0
        %668 = vmatprep.subr.mxu0 0.0
        %669 = vmatpush1.msra.mxu0 0.0
        %670 = vmatprep.mubr.f32.mxu0 0.0
        %671 = vmatmul.mubr.f32.gmra.mrb[0].mxu0 %v503
        %v672 = vpop.f32.mrb[0].mxu0
        %v673 = vadd.f32 %v484, %v672
        %v674 = vpop.f32.mrb[0].mxu0
        %675 = vmatprep.mubr.f32.mxu0 0.0
        %676 = vmatmul.mubr.f32.gmra.mrb[0].mxu0 %v506
        %v677 = vpop.f32.mrb[0].mxu0
        %v678 = vadd.f32 %v489, %v677
        %v679 = vpop.f32.mrb[0].mxu0
        %680 = vmatprep.mubr.f32.mxu0 0.0
        %681 = vmatmul.mubr.f32.gmra.mrb[0].mxu0 %v509
        %v682 = vpop.f32.mrb[0].mxu0
        %v683 = vadd.f32 %v494, %v682
        %v684 = vpop.f32.mrb[0].mxu0
        %685 = vmatprep.mubr.f32.mxu0 0.0
        %686 = vmatmul.mubr.f32.gmra.mrb[0].mxu0 %v512
        %v687 = vpop.f32.mrb[0].mxu0
        %v688 = vadd.f32 %v499, %v687
        %v689 = vpop.f32.mrb[0].mxu0
        %690 = vdwg.mxu0
        %v692 = vsel %vm514, %v473, 0
        %694 = vmatprep.subr.mxu0 0.0
        %695 = vmatpush1.msra.mxu0 %v692
        %696 = vmatprep.subr.mxu0 0.0
        %697 = vmatpush1.msra.mxu0 0.0
        %698 = vmatprep.subr.mxu0 0.0
        %699 = vmatpush1.msra.mxu0 0.0
        %700 = vmatprep.subr.mxu0 0.0
        %701 = vmatpush1.msra.mxu0 0.0
        %702 = vmatprep.subr.mxu0 0.0
        %703 = vmatpush1.msra.mxu0 0.0
        %704 = vmatprep.subr.mxu0 0.0
        %705 = vmatpush1.msra.mxu0 0.0
        %706 = vmatprep.subr.mxu0 0.0
        %707 = vmatpush1.msra.mxu0 0.0
        %708 = vmatprep.subr.mxu0 0.0
        %709 = vmatpush1.msra.mxu0 0.0
        %710 = vmatprep.subr.mxu0 0.0
        %711 = vmatpush1.msra.mxu0 0.0
        %712 = vmatprep.subr.mxu0 0.0
        %713 = vmatpush1.msra.mxu0 0.0
        %714 = vmatprep.subr.mxu0 0.0
        %715 = vmatpush1.msra.mxu0 0.0
        %716 = vmatprep.subr.mxu0 0.0
        %717 = vmatpush1.msra.mxu0 0.0
        %718 = vmatprep.subr.mxu0 0.0
        %719 = vmatpush1.msra.mxu0 0.0
        %720 = vmatprep.subr.mxu0 0.0
        %721 = vmatpush1.msra.mxu0 0.0
        %722 = vmatprep.subr.mxu0 0.0
        %723 = vmatpush1.msra.mxu0 0.0
        %724 = vmatprep.subr.mxu0 0.0
        %725 = vmatpush1.msra.mxu0 0.0
        %726 = vmatprep.subr.mxu0 0.0
        %727 = vmatpush1.msra.mxu0 0.0
        %728 = vmatprep.subr.mxu0 0.0
        %729 = vmatpush1.msra.mxu0 0.0
        %730 = vmatprep.subr.mxu0 0.0
        %731 = vmatpush1.msra.mxu0 0.0
        %732 = vmatprep.subr.mxu0 0.0
        %733 = vmatpush1.msra.mxu0 0.0
        %734 = vmatprep.subr.mxu0 0.0
        %735 = vmatpush1.msra.mxu0 0.0
        %736 = vmatprep.subr.mxu0 0.0
        %737 = vmatpush1.msra.mxu0 0.0
        %738 = vmatprep.subr.mxu0 0.0
        %739 = vmatpush1.msra.mxu0 0.0
        %740 = vmatprep.subr.mxu0 0.0
        %741 = vmatpush1.msra.mxu0 0.0
        %742 = vmatprep.subr.mxu0 0.0
        %743 = vmatpush1.msra.mxu0 0.0
        %744 = vmatprep.subr.mxu0 0.0
        %745 = vmatpush1.msra.mxu0 0.0
        %746 = vmatprep.subr.mxu0 0.0
        %747 = vmatpush1.msra.mxu0 0.0
        %748 = vmatprep.subr.mxu0 0.0
        %749 = vmatpush1.msra.mxu0 0.0
        %750 = vmatprep.subr.mxu0 0.0
        %751 = vmatpush1.msra.mxu0 0.0
        %752 = vmatprep.subr.mxu0 0.0
        %753 = vmatpush1.msra.mxu0 0.0
        %754 = vmatprep.subr.mxu0 0.0
        %755 = vmatpush1.msra.mxu0 0.0
        %756 = vmatprep.subr.mxu0 0.0
        %757 = vmatpush1.msra.mxu0 0.0
        %758 = vmatprep.mubr.f32.mxu0 0.0
        %759 = vmatmul.mubr.f32.gmra.mrb[0].mxu0 %v503
        %v760 = vpop.f32.mrb[0].mxu0
        %v761 = vadd.f32 %v484, %v760
        %v762 = vpop.f32.mrb[0].mxu0
        %763 = vmatprep.mubr.f32.mxu0 0.0
        %764 = vmatmul.mubr.f32.gmra.mrb[0].mxu0 %v506
        %v765 = vpop.f32.mrb[0].mxu0
        %v766 = vadd.f32 %v489, %v765
        %v767 = vpop.f32.mrb[0].mxu0
        %768 = vmatprep.mubr.f32.mxu0 0.0
        %769 = vmatmul.mubr.f32.gmra.mrb[0].mxu0 %v509
        %v770 = vpop.f32.mrb[0].mxu0
        %v771 = vadd.f32 %v494, %v770
        %v772 = vpop.f32.mrb[0].mxu0
        %773 = vmatprep.mubr.f32.mxu0 0.0
        %774 = vmatmul.mubr.f32.gmra.mrb[0].mxu0 %v512
        %v775 = vpop.f32.mrb[0].mxu0
        %v776 = vadd.f32 %v499, %v775
        %v777 = vpop.f32.mrb[0].mxu0
        %778 = vdwg.mxu0
        %v779 = vmax.f32 %v585, 0.0
        %v780 = vmax.f32 %v590, 0.0
        %v781 = vmax.f32 %v595, 0.0
        %v782 = vmax.f32 %v600, 0.0
        %v783 = vmax.f32 %v673, 0.0
        %v784 = vmax.f32 %v678, 0.0
        %v785 = vmax.f32 %v683, 0.0
        %v786 = vmax.f32 %v688, 0.0
        %v787 = vmax.f32 %v761, 0.0
        %v788 = vmax.f32 %v766, 0.0
        %v789 = vmax.f32 %v771, 0.0
        %v790 = vmax.f32 %v776, 0.0
        %v791 = vld [vmem:[%s5] sm:$0xff]
        %v792 = vld [vmem:[%s5 + $0x8] sm:$0xff]
        %v793 = vld [vmem:[%s5 + $0x10] sm:$0xff]
        %v794 = vld [vmem:[%s5 + $0x18] sm:$0xff]
        %796 = vset.pattern.permute.xlu0 0
        %797 = vperm.xlu0 %796, %v791
        %v798 = vpop.permute.xlu0 %797
        %801 = vset.pattern.permute.xlu0 0
        %802 = vperm.xlu0 %801, %v792
        %v803 = vpop.permute.xlu0 %802
        %806 = vset.pattern.permute.xlu0 0
        %807 = vperm.xlu0 %806, %v793
        %v808 = vpop.permute.xlu0 %807
        %811 = vset.pattern.permute.xlu0 0
        %812 = vperm.xlu0 %811, %v794
        %v813 = vpop.permute.xlu0 %812
        %vm815 = vcmask 23552
        %v817 = vsel %vm815, %v467, 0
        %v820 = vsel %vm815, %v468, 0
        %v823 = vsel %vm815, %v469, 0
        %v826 = vsel %vm815, %v470, 0
        %vm828 = vcmask 1042432
        %v830 = vsel %vm828, %v474, 0
        %832 = vmatprep.subr.mxu0 0.0
        %833 = vmatpush1.msra.mxu0 %v830
        %834 = vmatprep.subr.mxu0 0.0
        %835 = vmatpush1.msra.mxu0 0.0
        %836 = vmatprep.subr.mxu0 0.0
        %837 = vmatpush1.msra.mxu0 0.0
        %838 = vmatprep.subr.mxu0 0.0
        %839 = vmatpush1.msra.mxu0 0.0
        %840 = vmatprep.subr.mxu0 0.0
        %841 = vmatpush1.msra.mxu0 0.0
        %842 = vmatprep.subr.mxu0 0.0
        %843 = vmatpush1.msra.mxu0 0.0
        %844 = vmatprep.subr.mxu0 0.0
        %845 = vmatpush1.msra.mxu0 0.0
        %846 = vmatprep.subr.mxu0 0.0
        %847 = vmatpush1.msra.mxu0 0.0
        %848 = vmatprep.subr.mxu0 0.0
        %849 = vmatpush1.msra.mxu0 0.0
        %850 = vmatprep.subr.mxu0 0.0
        %851 = vmatpush1.msra.mxu0 0.0
        %852 = vmatprep.subr.mxu0 0.0
        %853 = vmatpush1.msra.mxu0 0.0
        %854 = vmatprep.subr.mxu0 0.0
        %855 = vmatpush1.msra.mxu0 0.0
        %856 = vmatprep.subr.mxu0 0.0
        %857 = vmatpush1.msra.mxu0 0.0
        %858 = vmatprep.subr.mxu0 0.0
        %859 = vmatpush1.msra.mxu0 0.0
        %860 = vmatprep.subr.mxu0 0.0
        %861 = vmatpush1.msra.mxu0 0.0
        %862 = vmatprep.subr.mxu0 0.0
        %863 = vmatpush1.msra.mxu0 0.0
        %864 = vmatprep.subr.mxu0 0.0
        %865 = vmatpush1.msra.mxu0 0.0
        %866 = vmatprep.subr.mxu0 0.0
        %867 = vmatpush1.msra.mxu0 0.0
        %868 = vmatprep.subr.mxu0 0.0
        %869 = vmatpush1.msra.mxu0 0.0
        %870 = vmatprep.subr.mxu0 0.0
        %871 = vmatpush1.msra.mxu0 0.0
        %872 = vmatprep.subr.mxu0 0.0
        %873 = vmatpush1.msra.mxu0 0.0
        %874 = vmatprep.subr.mxu0 0.0
        %875 = vmatpush1.msra.mxu0 0.0
        %876 = vmatprep.subr.mxu0 0.0
        %877 = vmatpush1.msra.mxu0 0.0
        %878 = vmatprep.subr.mxu0 0.0
        %879 = vmatpush1.msra.mxu0 0.0
        %880 = vmatprep.subr.mxu0 0.0
        %881 = vmatpush1.msra.mxu0 0.0
        %882 = vmatprep.subr.mxu0 0.0
        %883 = vmatpush1.msra.mxu0 0.0
        %884 = vmatprep.subr.mxu0 0.0
        %885 = vmatpush1.msra.mxu0 0.0
        %886 = vmatprep.subr.mxu0 0.0
        %887 = vmatpush1.msra.mxu0 0.0
        %888 = vmatprep.subr.mxu0 0.0
        %889 = vmatpush1.msra.mxu0 0.0
        %890 = vmatprep.subr.mxu0 0.0
        %891 = vmatpush1.msra.mxu0 0.0
        %892 = vmatprep.subr.mxu0 0.0
        %893 = vmatpush1.msra.mxu0 0.0
        %894 = vmatprep.subr.mxu0 0.0
        %895 = vmatpush1.msra.mxu0 0.0
        %896 = vmatprep.mubr.f32.mxu0 0.0
        %897 = vmatmul.mubr.f32.gmra.mrb[0].mxu0 %v817
        %v898 = vpop.f32.mrb[0].mxu0
        %v899 = vadd.f32 %v798, %v898
        %v900 = vpop.f32.mrb[0].mxu0
        %901 = vmatprep.mubr.f32.mxu0 0.0
        %902 = vmatmul.mubr.f32.gmra.mrb[0].mxu0 %v820
        %v903 = vpop.f32.mrb[0].mxu0
        %v904 = vadd.f32 %v803, %v903
        %v905 = vpop.f32.mrb[0].mxu0
        %906 = vmatprep.mubr.f32.mxu0 0.0
        %907 = vmatmul.mubr.f32.gmra.mrb[0].mxu0 %v823
        %v908 = vpop.f32.mrb[0].mxu0
        %v909 = vadd.f32 %v808, %v908
        %v910 = vpop.f32.mrb[0].mxu0
        %911 = vmatprep.mubr.f32.mxu0 0.0
        %912 = vmatmul.mubr.f32.gmra.mrb[0].mxu0 %v826
        %v913 = vpop.f32.mrb[0].mxu0
        %v914 = vadd.f32 %v813, %v913
        %v915 = vpop.f32.mrb[0].mxu0
        %916 = vdwg.mxu0
        %v918 = vsel %vm828, %v475, 0
        %920 = vmatprep.subr.mxu0 0.0
        %921 = vmatpush1.msra.mxu0 %v918
        %922 = vmatprep.subr.mxu0 0.0
        %923 = vmatpush1.msra.mxu0 0.0
        %924 = vmatprep.subr.mxu0 0.0
        %925 = vmatpush1.msra.mxu0 0.0
        %926 = vmatprep.subr.mxu0 0.0
        %927 = vmatpush1.msra.mxu0 0.0
        %928 = vmatprep.subr.mxu0 0.0
        %929 = vmatpush1.msra.mxu0 0.0
        %930 = vmatprep.subr.mxu0 0.0
        %931 = vmatpush1.msra.mxu0 0.0
        %932 = vmatprep.subr.mxu0 0.0
        %933 = vmatpush1.msra.mxu0 0.0
        %934 = vmatprep.subr.mxu0 0.0
        %935 = vmatpush1.msra.mxu0 0.0
        %936 = vmatprep.subr.mxu0 0.0
        %937 = vmatpush1.msra.mxu0 0.0
        %938 = vmatprep.subr.mxu0 0.0
        %939 = vmatpush1.msra.mxu0 0.0
        %940 = vmatprep.subr.mxu0 0.0
        %941 = vmatpush1.msra.mxu0 0.0
        %942 = vmatprep.subr.mxu0 0.0
        %943 = vmatpush1.msra.mxu0 0.0
        %944 = vmatprep.subr.mxu0 0.0
        %945 = vmatpush1.msra.mxu0 0.0
        %946 = vmatprep.subr.mxu0 0.0
        %947 = vmatpush1.msra.mxu0 0.0
        %948 = vmatprep.subr.mxu0 0.0
        %949 = vmatpush1.msra.mxu0 0.0
        %950 = vmatprep.subr.mxu0 0.0
        %951 = vmatpush1.msra.mxu0 0.0
        %952 = vmatprep.subr.mxu0 0.0
        %953 = vmatpush1.msra.mxu0 0.0
        %954 = vmatprep.subr.mxu0 0.0
        %955 = vmatpush1.msra.mxu0 0.0
        %956 = vmatprep.subr.mxu0 0.0
        %957 = vmatpush1.msra.mxu0 0.0
        %958 = vmatprep.subr.mxu0 0.0
        %959 = vmatpush1.msra.mxu0 0.0
        %960 = vmatprep.subr.mxu0 0.0
        %961 = vmatpush1.msra.mxu0 0.0
        %962 = vmatprep.subr.mxu0 0.0
        %963 = vmatpush1.msra.mxu0 0.0
        %964 = vmatprep.subr.mxu0 0.0
        %965 = vmatpush1.msra.mxu0 0.0
        %966 = vmatprep.subr.mxu0 0.0
        %967 = vmatpush1.msra.mxu0 0.0
        %968 = vmatprep.subr.mxu0 0.0
        %969 = vmatpush1.msra.mxu0 0.0
        %970 = vmatprep.subr.mxu0 0.0
        %971 = vmatpush1.msra.mxu0 0.0
        %972 = vmatprep.subr.mxu0 0.0
        %973 = vmatpush1.msra.mxu0 0.0
        %974 = vmatprep.subr.mxu0 0.0
        %975 = vmatpush1.msra.mxu0 0.0
        %976 = vmatprep.subr.mxu0 0.0
        %977 = vmatpush1.msra.mxu0 0.0
        %978 = vmatprep.subr.mxu0 0.0
        %979 = vmatpush1.msra.mxu0 0.0
        %980 = vmatprep.subr.mxu0 0.0
        %981 = vmatpush1.msra.mxu0 0.0
        %982 = vmatprep.subr.mxu0 0.0
        %983 = vmatpush1.msra.mxu0 0.0
        %984 = vmatprep.mubr.f32.mxu0 0.0
        %985 = vmatmul.mubr.f32.gmra.mrb[0].mxu0 %v817
        %v986 = vpop.f32.mrb[0].mxu0
        %v987 = vadd.f32 %v798, %v986
        %v988 = vpop.f32.mrb[0].mxu0
        %989 = vmatprep.mubr.f32.mxu0 0.0
        %990 = vmatmul.mubr.f32.gmra.mrb[0].mxu0 %v820
        %v991 = vpop.f32.mrb[0].mxu0
        %v992 = vadd.f32 %v803, %v991
        %v993 = vpop.f32.mrb[0].mxu0
        %994 = vmatprep.mubr.f32.mxu0 0.0
        %995 = vmatmul.mubr.f32.gmra.mrb[0].mxu0 %v823
        %v996 = vpop.f32.mrb[0].mxu0
        %v997 = vadd.f32 %v808, %v996
        %v998 = vpop.f32.mrb[0].mxu0
        %999 = vmatprep.mubr.f32.mxu0 0.0
        %1000 = vmatmul.mubr.f32.gmra.mrb[0].mxu0 %v826
        %v1001 = vpop.f32.mrb[0].mxu0
        %v1002 = vadd.f32 %v813, %v1001
        %v1003 = vpop.f32.mrb[0].mxu0
        %1004 = vdwg.mxu0
        %v1006 = vsel %vm828, %v476, 0
        %1008 = vmatprep.subr.mxu0 0.0
        %1009 = vmatpush1.msra.mxu0 %v1006
        %1010 = vmatprep.subr.mxu0 0.0
        %1011 = vmatpush1.msra.mxu0 0.0
        %1012 = vmatprep.subr.mxu0 0.0
        %1013 = vmatpush1.msra.mxu0 0.0
        %1014 = vmatprep.subr.mxu0 0.0
        %1015 = vmatpush1.msra.mxu0 0.0
        %1016 = vmatprep.subr.mxu0 0.0
        %1017 = vmatpush1.msra.mxu0 0.0
        %1018 = vmatprep.subr.mxu0 0.0
        %1019 = vmatpush1.msra.mxu0 0.0
        %1020 = vmatprep.subr.mxu0 0.0
        %1021 = vmatpush1.msra.mxu0 0.0
        %1022 = vmatprep.subr.mxu0 0.0
        %1023 = vmatpush1.msra.mxu0 0.0
        %1024 = vmatprep.subr.mxu0 0.0
        %1025 = vmatpush1.msra.mxu0 0.0
        %1026 = vmatprep.subr.mxu0 0.0
        %1027 = vmatpush1.msra.mxu0 0.0
        %1028 = vmatprep.subr.mxu0 0.0
        %1029 = vmatpush1.msra.mxu0 0.0
        %1030 = vmatprep.subr.mxu0 0.0
        %1031 = vmatpush1.msra.mxu0 0.0
        %1032 = vmatprep.subr.mxu0 0.0
        %1033 = vmatpush1.msra.mxu0 0.0
        %1034 = vmatprep.subr.mxu0 0.0
        %1035 = vmatpush1.msra.mxu0 0.0
        %1036 = vmatprep.subr.mxu0 0.0
        %1037 = vmatpush1.msra.mxu0 0.0
        %1038 = vmatprep.subr.mxu0 0.0
        %1039 = vmatpush1.msra.mxu0 0.0
        %1040 = vmatprep.subr.mxu0 0.0
        %1041 = vmatpush1.msra.mxu0 0.0
        %1042 = vmatprep.subr.mxu0 0.0
        %1043 = vmatpush1.msra.mxu0 0.0
        %1044 = vmatprep.subr.mxu0 0.0
        %1045 = vmatpush1.msra.mxu0 0.0
        %1046 = vmatprep.subr.mxu0 0.0
        %1047 = vmatpush1.msra.mxu0 0.0
        %1048 = vmatprep.subr.mxu0 0.0
        %1049 = vmatpush1.msra.mxu0 0.0
        %1050 = vmatprep.subr.mxu0 0.0
        %1051 = vmatpush1.msra.mxu0 0.0
        %1052 = vmatprep.subr.mxu0 0.0
        %1053 = vmatpush1.msra.mxu0 0.0
        %1054 = vmatprep.subr.mxu0 0.0
        %1055 = vmatpush1.msra.mxu0 0.0
        %1056 = vmatprep.subr.mxu0 0.0
        %1057 = vmatpush1.msra.mxu0 0.0
        %1058 = vmatprep.subr.mxu0 0.0
        %1059 = vmatpush1.msra.mxu0 0.0
        %1060 = vmatprep.subr.mxu0 0.0
        %1061 = vmatpush1.msra.mxu0 0.0
        %1062 = vmatprep.subr.mxu0 0.0
        %1063 = vmatpush1.msra.mxu0 0.0
        %1064 = vmatprep.subr.mxu0 0.0
        %1065 = vmatpush1.msra.mxu0 0.0
        %1066 = vmatprep.subr.mxu0 0.0
        %1067 = vmatpush1.msra.mxu0 0.0
        %1068 = vmatprep.subr.mxu0 0.0
        %1069 = vmatpush1.msra.mxu0 0.0
        %1070 = vmatprep.subr.mxu0 0.0
        %1071 = vmatpush1.msra.mxu0 0.0
        %1072 = vmatprep.mubr.f32.mxu0 0.0
        %1073 = vmatmul.mubr.f32.gmra.mrb[0].mxu0 %v817
        %v1074 = vpop.f32.mrb[0].mxu0
        %v1075 = vadd.f32 %v798, %v1074
        %v1076 = vpop.f32.mrb[0].mxu0
        %1077 = vmatprep.mubr.f32.mxu0 0.0
        %1078 = vmatmul.mubr.f32.gmra.mrb[0].mxu0 %v820
        %v1079 = vpop.f32.mrb[0].mxu0
        %v1080 = vadd.f32 %v803, %v1079
        %v1081 = vpop.f32.mrb[0].mxu0
        %1082 = vmatprep.mubr.f32.mxu0 0.0
        %1083 = vmatmul.mubr.f32.gmra.mrb[0].mxu0 %v823
        %v1084 = vpop.f32.mrb[0].mxu0
        %v1085 = vadd.f32 %v808, %v1084
        %v1086 = vpop.f32.mrb[0].mxu0
        %1087 = vmatprep.mubr.f32.mxu0 0.0
        %1088 = vmatmul.mubr.f32.gmra.mrb[0].mxu0 %v826
        %v1089 = vpop.f32.mrb[0].mxu0
        %v1090 = vadd.f32 %v813, %v1089
        %v1091 = vpop.f32.mrb[0].mxu0
        %1092 = vdwg.mxu0
        %v1093 = vmax.f32 %v899, 0.0
        %v1094 = vmax.f32 %v904, 0.0
        %v1095 = vmax.f32 %v909, 0.0
        %v1096 = vmax.f32 %v914, 0.0
        %v1097 = vmax.f32 %v987, 0.0
        %v1098 = vmax.f32 %v992, 0.0
        %v1099 = vmax.f32 %v997, 0.0
        %v1100 = vmax.f32 %v1002, 0.0
        %v1101 = vmax.f32 %v1075, 0.0
        %v1102 = vmax.f32 %v1080, 0.0
        %v1103 = vmax.f32 %v1085, 0.0
        %v1104 = vmax.f32 %v1090, 0.0
        %v1105 = vld [vmem:[%s6] sm:$0xff]
        %v1106 = vld [vmem:[%s6 + $0x8] sm:$0xff]
        %v1107 = vld [vmem:[%s7] sm:$0xff]
        %vm1108 = vcmask 64512
        %v1110 = vsel %vm1108, %v1093, 0
        %v1113 = vsel %vm1108, %v1094, 0
        %v1116 = vsel %vm1108, %v1095, 0
        %v1119 = vsel %vm1108, %v1096, 0
        %v1122 = vsel %vm1108, %v1097, 0
        %v1125 = vsel %vm1108, %v1098, 0
        %v1128 = vsel %vm1108, %v1099, 0
        %v1131 = vsel %vm1108, %v1100, 0
        %v1134 = vsel %vm1108, %v1101, 0
        %v1137 = vsel %vm1108, %v1102, 0
        %v1140 = vsel %vm1108, %v1103, 0
        %v1143 = vsel %vm1108, %v1104, 0
        %1145 = vmatprep.subr.mxu0 0.0
        %1146 = vmatpush1.msra.mxu0 %v1107
        %1147 = vmatprep.subr.mxu0 0.0
        %1148 = vmatpush1.msra.mxu0 0.0
        %1149 = vmatprep.subr.mxu0 0.0
        %1150 = vmatpush1.msra.mxu0 0.0
        %1151 = vmatprep.subr.mxu0 0.0
        %1152 = vmatpush1.msra.mxu0 0.0
        %1153 = vmatprep.subr.mxu0 0.0
        %1154 = vmatpush1.msra.mxu0 0.0
        %1155 = vmatprep.subr.mxu0 0.0
        %1156 = vmatpush1.msra.mxu0 0.0
        %1157 = vmatprep.subr.mxu0 0.0
        %1158 = vmatpush1.msra.mxu0 0.0
        %1159 = vmatprep.subr.mxu0 0.0
        %1160 = vmatpush1.msra.mxu0 0.0
        %1161 = vmatprep.subr.mxu0 0.0
        %1162 = vmatpush1.msra.mxu0 0.0
        %1163 = vmatprep.subr.mxu0 0.0
        %1164 = vmatpush1.msra.mxu0 0.0
        %1165 = vmatprep.subr.mxu0 0.0
        %1166 = vmatpush1.msra.mxu0 0.0
        %1167 = vmatprep.subr.mxu0 0.0
        %1168 = vmatpush1.msra.mxu0 0.0
        %1169 = vmatprep.subr.mxu0 0.0
        %1170 = vmatpush1.msra.mxu0 0.0
        %1171 = vmatprep.subr.mxu0 0.0
        %1172 = vmatpush1.msra.mxu0 0.0
        %1173 = vmatprep.subr.mxu0 0.0
        %1174 = vmatpush1.msra.mxu0 0.0
        %1175 = vmatprep.subr.mxu0 0.0
        %1176 = vmatpush1.msra.mxu0 0.0
        %1177 = vmatprep.subr.mxu0 0.0
        %1178 = vmatpush1.msra.mxu0 0.0
        %1179 = vmatprep.subr.mxu0 0.0
        %1180 = vmatpush1.msra.mxu0 0.0
        %1181 = vmatprep.subr.mxu0 0.0
        %1182 = vmatpush1.msra.mxu0 0.0
        %1183 = vmatprep.subr.mxu0 0.0
        %1184 = vmatpush1.msra.mxu0 0.0
        %1185 = vmatprep.subr.mxu0 0.0
        %1186 = vmatpush1.msra.mxu0 0.0
        %1187 = vmatprep.subr.mxu0 0.0
        %1188 = vmatpush1.msra.mxu0 0.0
        %1189 = vmatprep.subr.mxu0 0.0
        %1190 = vmatpush1.msra.mxu0 0.0
        %1191 = vmatprep.subr.mxu0 0.0
        %1192 = vmatpush1.msra.mxu0 0.0
        %1193 = vmatprep.subr.mxu0 0.0
        %1194 = vmatpush1.msra.mxu0 0.0
        %1195 = vmatprep.subr.mxu0 0.0
        %1196 = vmatpush1.msra.mxu0 0.0
        %1197 = vmatprep.subr.mxu0 0.0
        %1198 = vmatpush1.msra.mxu0 0.0
        %1199 = vmatprep.subr.mxu0 0.0
        %1200 = vmatpush1.msra.mxu0 0.0
        %1201 = vmatprep.subr.mxu0 0.0
        %1202 = vmatpush1.msra.mxu0 0.0
        %1203 = vmatprep.subr.mxu0 0.0
        %1204 = vmatpush1.msra.mxu0 0.0
        %1205 = vmatprep.subr.mxu0 0.0
        %1206 = vmatpush1.msra.mxu0 0.0
        %1207 = vmatprep.subr.mxu0 0.0
        %1208 = vmatpush1.msra.mxu0 0.0
        %1209 = vmatprep.mubr.f32.mxu0 0.0
        %1210 = vmatmul.mubr.f32.gmra.mrb[0].mxu0 %v1110
        %v1211 = vpop.f32.mrb[0].mxu0
        %v1212 = vadd.f32 0.0, %v1211
        %v1213 = vpop.f32.mrb[0].mxu0
        %1214 = vmatprep.mubr.f32.mxu0 0.0
        %1215 = vmatmul.mubr.f32.gmra.mrb[0].mxu0 %v1113
        %v1216 = vpop.f32.mrb[0].mxu0
        %v1217 = vadd.f32 0.0, %v1216
        %v1218 = vpop.f32.mrb[0].mxu0
        %1219 = vmatprep.mubr.f32.mxu0 0.0
        %1220 = vmatmul.mubr.f32.gmra.mrb[0].mxu0 %v1116
        %v1221 = vpop.f32.mrb[0].mxu0
        %v1222 = vadd.f32 0.0, %v1221
        %v1223 = vpop.f32.mrb[0].mxu0
        %1224 = vmatprep.mubr.f32.mxu0 0.0
        %1225 = vmatmul.mubr.f32.gmra.mrb[0].mxu0 %v1119
        %v1226 = vpop.f32.mrb[0].mxu0
        %v1227 = vadd.f32 0.0, %v1226
        %v1228 = vpop.f32.mrb[0].mxu0
        %1229 = vmatprep.mubr.f32.mxu0 0.0
        %1230 = vmatmul.mubr.f32.gmra.mrb[0].mxu0 %v1122
        %v1231 = vpop.f32.mrb[0].mxu0
        %v1232 = vadd.f32 0.0, %v1231
        %v1233 = vpop.f32.mrb[0].mxu0
        %1234 = vmatprep.mubr.f32.mxu0 0.0
        %1235 = vmatmul.mubr.f32.gmra.mrb[0].mxu0 %v1125
        %v1236 = vpop.f32.mrb[0].mxu0
        %v1237 = vadd.f32 0.0, %v1236
        %v1238 = vpop.f32.mrb[0].mxu0
        %1239 = vmatprep.mubr.f32.mxu0 0.0
        %1240 = vmatmul.mubr.f32.gmra.mrb[0].mxu0 %v1128
        %v1241 = vpop.f32.mrb[0].mxu0
        %v1242 = vadd.f32 0.0, %v1241
        %v1243 = vpop.f32.mrb[0].mxu0
        %1244 = vmatprep.mubr.f32.mxu0 0.0
        %1245 = vmatmul.mubr.f32.gmra.mrb[0].mxu0 %v1131
        %v1246 = vpop.f32.mrb[0].mxu0
        %v1247 = vadd.f32 0.0, %v1246
        %v1248 = vpop.f32.mrb[0].mxu0
        %1249 = vmatprep.mubr.f32.mxu0 0.0
        %1250 = vmatmul.mubr.f32.gmra.mrb[0].mxu0 %v1134
        %v1251 = vpop.f32.mrb[0].mxu0
        %v1252 = vadd.f32 0.0, %v1251
        %v1253 = vpop.f32.mrb[0].mxu0
        %1254 = vmatprep.mubr.f32.mxu0 0.0
        %1255 = vmatmul.mubr.f32.gmra.mrb[0].mxu0 %v1137
        %v1256 = vpop.f32.mrb[0].mxu0
        %v1257 = vadd.f32 0.0, %v1256
        %v1258 = vpop.f32.mrb[0].mxu0
        %1259 = vmatprep.mubr.f32.mxu0 0.0
        %1260 = vmatmul.mubr.f32.gmra.mrb[0].mxu0 %v1140
        %v1261 = vpop.f32.mrb[0].mxu0
        %v1262 = vadd.f32 0.0, %v1261
        %v1263 = vpop.f32.mrb[0].mxu0
        %1264 = vmatprep.mubr.f32.mxu0 0.0
        %1265 = vmatmul.mubr.f32.gmra.mrb[0].mxu0 %v1143
        %v1266 = vpop.f32.mrb[0].mxu0
        %v1267 = vadd.f32 0.0, %v1266
        %v1268 = vpop.f32.mrb[0].mxu0
        %1269 = vdwg.mxu0
        %vm1270 = vcmask 130048
        %v1272 = vsel %vm1270, %v779, 0
        %v1275 = vsel %vm1270, %v780, 0
        %v1278 = vsel %vm1270, %v781, 0
        %v1281 = vsel %vm1270, %v782, 0
        %v1284 = vsel %vm1270, %v783, 0
        %v1287 = vsel %vm1270, %v784, 0
        %v1290 = vsel %vm1270, %v785, 0
        %v1293 = vsel %vm1270, %v786, 0
        %v1296 = vsel %vm1270, %v787, 0
        %v1299 = vsel %vm1270, %v788, 0
        %v1302 = vsel %vm1270, %v789, 0
        %v1305 = vsel %vm1270, %v790, 0
        %1307 = vmatprep.subr.mxu0 0.0
        %1308 = vmatpush1.msra.mxu0 %v1105
        %1309 = vmatprep.subr.mxu0 0.0
        %1310 = vmatpush1.msra.mxu0 %v1106
        %1311 = vmatprep.subr.mxu0 0.0
        %1312 = vmatpush1.msra.mxu0 0.0
        %1313 = vmatprep.subr.mxu0 0.0
        %1314 = vmatpush1.msra.mxu0 0.0
        %1315 = vmatprep.subr.mxu0 0.0
        %1316 = vmatpush1.msra.mxu0 0.0
        %1317 = vmatprep.subr.mxu0 0.0
        %1318 = vmatpush1.msra.mxu0 0.0
        %1319 = vmatprep.subr.mxu0 0.0
        %1320 = vmatpush1.msra.mxu0 0.0
        %1321 = vmatprep.subr.mxu0 0.0
        %1322 = vmatpush1.msra.mxu0 0.0
        %1323 = vmatprep.subr.mxu0 0.0
        %1324 = vmatpush1.msra.mxu0 0.0
        %1325 = vmatprep.subr.mxu0 0.0
        %1326 = vmatpush1.msra.mxu0 0.0
        %1327 = vmatprep.subr.mxu0 0.0
        %1328 = vmatpush1.msra.mxu0 0.0
        %1329 = vmatprep.subr.mxu0 0.0
        %1330 = vmatpush1.msra.mxu0 0.0
        %1331 = vmatprep.subr.mxu0 0.0
        %1332 = vmatpush1.msra.mxu0 0.0
        %1333 = vmatprep.subr.mxu0 0.0
        %1334 = vmatpush1.msra.mxu0 0.0
        %1335 = vmatprep.subr.mxu0 0.0
        %1336 = vmatpush1.msra.mxu0 0.0
        %1337 = vmatprep.subr.mxu0 0.0
        %1338 = vmatpush1.msra.mxu0 0.0
        %1339 = vmatprep.subr.mxu0 0.0
        %1340 = vmatpush1.msra.mxu0 0.0
        %1341 = vmatprep.subr.mxu0 0.0
        %1342 = vmatpush1.msra.mxu0 0.0
        %1343 = vmatprep.subr.mxu0 0.0
        %1344 = vmatpush1.msra.mxu0 0.0
        %1345 = vmatprep.subr.mxu0 0.0
        %1346 = vmatpush1.msra.mxu0 0.0
        %1347 = vmatprep.subr.mxu0 0.0
        %1348 = vmatpush1.msra.mxu0 0.0
        %1349 = vmatprep.subr.mxu0 0.0
        %1350 = vmatpush1.msra.mxu0 0.0
        %1351 = vmatprep.subr.mxu0 0.0
        %1352 = vmatpush1.msra.mxu0 0.0
        %1353 = vmatprep.subr.mxu0 0.0
        %1354 = vmatpush1.msra.mxu0 0.0
        %1355 = vmatprep.subr.mxu0 0.0
        %1356 = vmatpush1.msra.mxu0 0.0
        %1357 = vmatprep.subr.mxu0 0.0
        %1358 = vmatpush1.msra.mxu0 0.0
        %1359 = vmatprep.subr.mxu0 0.0
        %1360 = vmatpush1.msra.mxu0 0.0
        %1361 = vmatprep.subr.mxu0 0.0
        %1362 = vmatpush1.msra.mxu0 0.0
        %1363 = vmatprep.subr.mxu0 0.0
        %1364 = vmatpush1.msra.mxu0 0.0
        %1365 = vmatprep.subr.mxu0 0.0
        %1366 = vmatpush1.msra.mxu0 0.0
        %1367 = vmatprep.subr.mxu0 0.0
        %1368 = vmatpush1.msra.mxu0 0.0
        %1369 = vmatprep.subr.mxu0 0.0
        %1370 = vmatpush1.msra.mxu0 0.0
        %1371 = vmatprep.mubr.f32.mxu0 0.0
        %1372 = vmatmul.mubr.f32.gmra.mrb[0].mxu0 %v1272
        %v1373 = vpop.f32.mrb[0].mxu0
        %v1374 = vadd.f32 %v1212, %v1373
        %v1375 = vpop.f32.mrb[0].mxu0
        %1376 = vmatprep.mubr.f32.mxu0 0.0
        %1377 = vmatmul.mubr.f32.gmra.mrb[0].mxu0 %v1275
        %v1378 = vpop.f32.mrb[0].mxu0
        %v1379 = vadd.f32 %v1217, %v1378
        %v1380 = vpop.f32.mrb[0].mxu0
        %1381 = vmatprep.mubr.f32.mxu0 0.0
        %1382 = vmatmul.mubr.f32.gmra.mrb[0].mxu0 %v1278
        %v1383 = vpop.f32.mrb[0].mxu0
        %v1384 = vadd.f32 %v1222, %v1383
        %v1385 = vpop.f32.mrb[0].mxu0
        %1386 = vmatprep.mubr.f32.mxu0 0.0
        %1387 = vmatmul.mubr.f32.gmra.mrb[0].mxu0 %v1281
        %v1388 = vpop.f32.mrb[0].mxu0
        %v1389 = vadd.f32 %v1227, %v1388
        %v1390 = vpop.f32.mrb[0].mxu0
        %1391 = vmatprep.mubr.f32.mxu0 0.0
        %1392 = vmatmul.mubr.f32.gmra.mrb[0].mxu0 %v1284
        %v1393 = vpop.f32.mrb[0].mxu0
        %v1394 = vadd.f32 %v1232, %v1393
        %v1395 = vpop.f32.mrb[0].mxu0
        %1396 = vmatprep.mubr.f32.mxu0 0.0
        %1397 = vmatmul.mubr.f32.gmra.mrb[0].mxu0 %v1287
        %v1398 = vpop.f32.mrb[0].mxu0
        %v1399 = vadd.f32 %v1237, %v1398
        %v1400 = vpop.f32.mrb[0].mxu0
        %1401 = vmatprep.mubr.f32.mxu0 0.0
        %1402 = vmatmul.mubr.f32.gmra.mrb[0].mxu0 %v1290
        %v1403 = vpop.f32.mrb[0].mxu0
        %v1404 = vadd.f32 %v1242, %v1403
        %v1405 = vpop.f32.mrb[0].mxu0
        %1406 = vmatprep.mubr.f32.mxu0 0.0
        %1407 = vmatmul.mubr.f32.gmra.mrb[0].mxu0 %v1293
        %v1408 = vpop.f32.mrb[0].mxu0
        %v1409 = vadd.f32 %v1247, %v1408
        %v1410 = vpop.f32.mrb[0].mxu0
        %1411 = vmatprep.mubr.f32.mxu0 0.0
        %1412 = vmatmul.mubr.f32.gmra.mrb[0].mxu0 %v1296
        %v1413 = vpop.f32.mrb[0].mxu0
        %v1414 = vadd.f32 %v1252, %v1413
        %v1415 = vpop.f32.mrb[0].mxu0
        %1416 = vmatprep.mubr.f32.mxu0 0.0
        %1417 = vmatmul.mubr.f32.gmra.mrb[0].mxu0 %v1299
        %v1418 = vpop.f32.mrb[0].mxu0
        %v1419 = vadd.f32 %v1257, %v1418
        %v1420 = vpop.f32.mrb[0].mxu0
        %1421 = vmatprep.mubr.f32.mxu0 0.0
        %1422 = vmatmul.mubr.f32.gmra.mrb[0].mxu0 %v1302
        %v1423 = vpop.f32.mrb[0].mxu0
        %v1424 = vadd.f32 %v1262, %v1423
        %v1425 = vpop.f32.mrb[0].mxu0
        %1426 = vmatprep.mubr.f32.mxu0 0.0
        %1427 = vmatmul.mubr.f32.gmra.mrb[0].mxu0 %v1305
        %v1428 = vpop.f32.mrb[0].mxu0
        %v1429 = vadd.f32 %v1267, %v1428
        %v1430 = vpop.f32.mrb[0].mxu0
        %1431 = vdwg.mxu0
        %v1432 = vld [vmem:[%s8] sm:$0x1]
        %v1434 = vlaneseq
        %v1435 = vshrl.u32 %v1434, 7
        %v1436 = vsub.s32 0, %v1435
        %v1437 = vrot.slane %v1432, %v1436
        %v1439 = vadd.f32 %v1374, %v1437
        %v1440 = vadd.f32 %v1379, %v1437
        %v1441 = vadd.f32 %v1384, %v1437
        %v1442 = vadd.f32 %v1389, %v1437
        %v1443 = vadd.f32 %v1394, %v1437
        %v1444 = vadd.f32 %v1399, %v1437
        %v1445 = vadd.f32 %v1404, %v1437
        %v1446 = vadd.f32 %v1409, %v1437
        %v1447 = vadd.f32 %v1414, %v1437
        %v1448 = vadd.f32 %v1419, %v1437
        %v1449 = vadd.f32 %v1424, %v1437
        %v1450 = vadd.f32 %v1429, %v1437
        %v1451 = vmax.f32 %v1439, 0.0
        %v1452 = vmax.f32 %v1440, 0.0
        %v1453 = vmax.f32 %v1441, 0.0
        %v1454 = vmax.f32 %v1442, 0.0
        %v1455 = vmax.f32 %v1443, 0.0
        %v1456 = vmax.f32 %v1444, 0.0
        %v1457 = vmax.f32 %v1445, 0.0
        %v1458 = vmax.f32 %v1446, 0.0
        %v1459 = vmax.f32 %v1447, 0.0
        %v1460 = vmax.f32 %v1448, 0.0
        %v1461 = vmax.f32 %v1449, 0.0
        %v1462 = vmax.f32 %v1450, 0.0
        %v1463 = vld [vmem:[%s9] sm:$0xff]
        %v1464 = vld [vmem:[%s9 + $0x8] sm:$0xff]
        %v1465 = vld [vmem:[%s9 + $0x10] sm:$0xff]
        %v1466 = vld [vmem:[%s9 + $0x18] sm:$0xff]
        %v1467 = vld [vmem:[%s10] sm:$0x1]
        %v1469 = vlaneseq
        %v1470 = vshrl.u32 %v1469, 7
        %v1471 = vsub.s32 0, %v1470
        %v1472 = vrot.slane %v1467, %v1471
        %vm1474 = vcmask 261120
        %v1476 = vsel %vm1474, %v1451, 0
        %v1479 = vsel %vm1474, %v1452, 0
        %v1482 = vsel %vm1474, %v1453, 0
        %v1485 = vsel %vm1474, %v1454, 0
        %v1488 = vsel %vm1474, %v1455, 0
        %v1491 = vsel %vm1474, %v1456, 0
        %v1494 = vsel %vm1474, %v1457, 0
        %v1497 = vsel %vm1474, %v1458, 0
        %v1500 = vsel %vm1474, %v1459, 0
        %v1503 = vsel %vm1474, %v1460, 0
        %v1506 = vsel %vm1474, %v1461, 0
        %v1509 = vsel %vm1474, %v1462, 0
        %1511 = vmatprep.subr.mxu0 0.0
        %1512 = vmatpush1.msra.mxu0 %v1463
        %1513 = vmatprep.subr.mxu0 0.0
        %1514 = vmatpush1.msra.mxu0 %v1464
        %1515 = vmatprep.subr.mxu0 0.0
        %1516 = vmatpush1.msra.mxu0 %v1465
        %1517 = vmatprep.subr.mxu0 0.0
        %1518 = vmatpush1.msra.mxu0 %v1466
        %1519 = vmatprep.subr.mxu0 0.0
        %1520 = vmatpush1.msra.mxu0 0.0
        %1521 = vmatprep.subr.mxu0 0.0
        %1522 = vmatpush1.msra.mxu0 0.0
        %1523 = vmatprep.subr.mxu0 0.0
        %1524 = vmatpush1.msra.mxu0 0.0
        %1525 = vmatprep.subr.mxu0 0.0
        %1526 = vmatpush1.msra.mxu0 0.0
        %1527 = vmatprep.subr.mxu0 0.0
        %1528 = vmatpush1.msra.mxu0 0.0
        %1529 = vmatprep.subr.mxu0 0.0
        %1530 = vmatpush1.msra.mxu0 0.0
        %1531 = vmatprep.subr.mxu0 0.0
        %1532 = vmatpush1.msra.mxu0 0.0
        %1533 = vmatprep.subr.mxu0 0.0
        %1534 = vmatpush1.msra.mxu0 0.0
        %1535 = vmatprep.subr.mxu0 0.0
        %1536 = vmatpush1.msra.mxu0 0.0
        %1537 = vmatprep.subr.mxu0 0.0
        %1538 = vmatpush1.msra.mxu0 0.0
        %1539 = vmatprep.subr.mxu0 0.0
        %1540 = vmatpush1.msra.mxu0 0.0
        %1541 = vmatprep.subr.mxu0 0.0
        %1542 = vmatpush1.msra.mxu0 0.0
        %1543 = vmatprep.subr.mxu0 0.0
        %1544 = vmatpush1.msra.mxu0 0.0
        %1545 = vmatprep.subr.mxu0 0.0
        %1546 = vmatpush1.msra.mxu0 0.0
        %1547 = vmatprep.subr.mxu0 0.0
        %1548 = vmatpush1.msra.mxu0 0.0
        %1549 = vmatprep.subr.mxu0 0.0
        %1550 = vmatpush1.msra.mxu0 0.0
        %1551 = vmatprep.subr.mxu0 0.0
        %1552 = vmatpush1.msra.mxu0 0.0
        %1553 = vmatprep.subr.mxu0 0.0
        %1554 = vmatpush1.msra.mxu0 0.0
        %1555 = vmatprep.subr.mxu0 0.0
        %1556 = vmatpush1.msra.mxu0 0.0
        %1557 = vmatprep.subr.mxu0 0.0
        %1558 = vmatpush1.msra.mxu0 0.0
        %1559 = vmatprep.subr.mxu0 0.0
        %1560 = vmatpush1.msra.mxu0 0.0
        %1561 = vmatprep.subr.mxu0 0.0
        %1562 = vmatpush1.msra.mxu0 0.0
        %1563 = vmatprep.subr.mxu0 0.0
        %1564 = vmatpush1.msra.mxu0 0.0
        %1565 = vmatprep.subr.mxu0 0.0
        %1566 = vmatpush1.msra.mxu0 0.0
        %1567 = vmatprep.subr.mxu0 0.0
        %1568 = vmatpush1.msra.mxu0 0.0
        %1569 = vmatprep.subr.mxu0 0.0
        %1570 = vmatpush1.msra.mxu0 0.0
        %1571 = vmatprep.subr.mxu0 0.0
        %1572 = vmatpush1.msra.mxu0 0.0
        %1573 = vmatprep.subr.mxu0 0.0
        %1574 = vmatpush1.msra.mxu0 0.0
        %1575 = vmatprep.mubr.f32.mxu0 0.0
        %1576 = vmatmul.mubr.f32.gmra.mrb[0].mxu0 %v1476
        %v1577 = vpop.f32.mrb[0].mxu0
        %v1578 = vadd.f32 %v1472, %v1577
        %v1579 = vpop.f32.mrb[0].mxu0
        %1580 = vmatprep.mubr.f32.mxu0 0.0
        %1581 = vmatmul.mubr.f32.gmra.mrb[0].mxu0 %v1479
        %v1582 = vpop.f32.mrb[0].mxu0
        %v1583 = vadd.f32 %v1472, %v1582
        %v1584 = vpop.f32.mrb[0].mxu0
        %1585 = vmatprep.mubr.f32.mxu0 0.0
        %1586 = vmatmul.mubr.f32.gmra.mrb[0].mxu0 %v1482
        %v1587 = vpop.f32.mrb[0].mxu0
        %v1588 = vadd.f32 %v1472, %v1587
        %v1589 = vpop.f32.mrb[0].mxu0
        %1590 = vmatprep.mubr.f32.mxu0 0.0
        %1591 = vmatmul.mubr.f32.gmra.mrb[0].mxu0 %v1485
        %v1592 = vpop.f32.mrb[0].mxu0
        %v1593 = vadd.f32 %v1472, %v1592
        %v1594 = vpop.f32.mrb[0].mxu0
        %1595 = vmatprep.mubr.f32.mxu0 0.0
        %1596 = vmatmul.mubr.f32.gmra.mrb[0].mxu0 %v1488
        %v1597 = vpop.f32.mrb[0].mxu0
        %v1598 = vadd.f32 %v1472, %v1597
        %v1599 = vpop.f32.mrb[0].mxu0
        %1600 = vmatprep.mubr.f32.mxu0 0.0
        %1601 = vmatmul.mubr.f32.gmra.mrb[0].mxu0 %v1491
        %v1602 = vpop.f32.mrb[0].mxu0
        %v1603 = vadd.f32 %v1472, %v1602
        %v1604 = vpop.f32.mrb[0].mxu0
        %1605 = vmatprep.mubr.f32.mxu0 0.0
        %1606 = vmatmul.mubr.f32.gmra.mrb[0].mxu0 %v1494
        %v1607 = vpop.f32.mrb[0].mxu0
        %v1608 = vadd.f32 %v1472, %v1607
        %v1609 = vpop.f32.mrb[0].mxu0
        %1610 = vmatprep.mubr.f32.mxu0 0.0
        %1611 = vmatmul.mubr.f32.gmra.mrb[0].mxu0 %v1497
        %v1612 = vpop.f32.mrb[0].mxu0
        %v1613 = vadd.f32 %v1472, %v1612
        %v1614 = vpop.f32.mrb[0].mxu0
        %1615 = vmatprep.mubr.f32.mxu0 0.0
        %1616 = vmatmul.mubr.f32.gmra.mrb[0].mxu0 %v1500
        %v1617 = vpop.f32.mrb[0].mxu0
        %v1618 = vadd.f32 %v1472, %v1617
        %v1619 = vpop.f32.mrb[0].mxu0
        %1620 = vmatprep.mubr.f32.mxu0 0.0
        %1621 = vmatmul.mubr.f32.gmra.mrb[0].mxu0 %v1503
        %v1622 = vpop.f32.mrb[0].mxu0
        %v1623 = vadd.f32 %v1472, %v1622
        %v1624 = vpop.f32.mrb[0].mxu0
        %1625 = vmatprep.mubr.f32.mxu0 0.0
        %1626 = vmatmul.mubr.f32.gmra.mrb[0].mxu0 %v1506
        %v1627 = vpop.f32.mrb[0].mxu0
        %v1628 = vadd.f32 %v1472, %v1627
        %v1629 = vpop.f32.mrb[0].mxu0
        %1630 = vmatprep.mubr.f32.mxu0 0.0
        %1631 = vmatmul.mubr.f32.gmra.mrb[0].mxu0 %v1509
        %v1632 = vpop.f32.mrb[0].mxu0
        %v1633 = vadd.f32 %v1472, %v1632
        %v1634 = vpop.f32.mrb[0].mxu0
        %1635 = vdwg.mxu0
        %v1636 = vmax.f32 %v1578, 0.0
        %v1637 = vmax.f32 %v1583, 0.0
        %v1638 = vmax.f32 %v1588, 0.0
        %v1639 = vmax.f32 %v1593, 0.0
        %v1640 = vmax.f32 %v1598, 0.0
        %v1641 = vmax.f32 %v1603, 0.0
        %v1642 = vmax.f32 %v1608, 0.0
        %v1643 = vmax.f32 %v1613, 0.0
        %v1644 = vmax.f32 %v1618, 0.0
        %v1645 = vmax.f32 %v1623, 0.0
        %v1646 = vmax.f32 %v1628, 0.0
        %v1647 = vmax.f32 %v1633, 0.0
        %v1648 = vld [vmem:[%s11] sm:$0xff]
        %v1649 = vld [vmem:[%s11 + $0x8] sm:$0xff]
        %v1650 = vld [vmem:[%s11 + $0x10] sm:$0xff]
        %v1651 = vld [vmem:[%s11 + $0x18] sm:$0xff]
        %v1652 = vmul.f32 %v1636, %v1648
        %v1653 = vmul.f32 %v1637, %v1649
        %v1654 = vmul.f32 %v1638, %v1650
        %v1655 = vmul.f32 %v1639, %v1651
        %v1656 = vmul.f32 %v1640, %v1648
        %v1657 = vmul.f32 %v1641, %v1649
        %v1658 = vmul.f32 %v1642, %v1650
        %v1659 = vmul.f32 %v1643, %v1651
        %v1660 = vmul.f32 %v1644, %v1648
        %v1661 = vmul.f32 %v1645, %v1649
        %v1662 = vmul.f32 %v1646, %v1650
        %v1663 = vmul.f32 %v1647, %v1651
        %v1664 = vsel %vm1270, %v1652, 0.0
        %1665 = vadd.xlane.f32.xlu0 %v1664
        %v1666 = vpop.xlane.xlu0 %1665
        %v1667 = vsel %vm1270, %v1653, 0.0
        %1668 = vadd.xlane.f32.xlu0 %v1667
        %v1669 = vpop.xlane.xlu0 %1668
        %v1670 = vsel %vm1270, %v1654, 0.0
        %1671 = vadd.xlane.f32.xlu0 %v1670
        %v1672 = vpop.xlane.xlu0 %1671
        %v1673 = vsel %vm1270, %v1655, 0.0
        %1674 = vadd.xlane.f32.xlu0 %v1673
        %v1675 = vpop.xlane.xlu0 %1674
        %v1676 = vsel %vm1270, %v1656, 0.0
        %1677 = vadd.xlane.f32.xlu0 %v1676
        %v1678 = vpop.xlane.xlu0 %1677
        %v1679 = vsel %vm1270, %v1657, 0.0
        %1680 = vadd.xlane.f32.xlu0 %v1679
        %v1681 = vpop.xlane.xlu0 %1680
        %v1682 = vsel %vm1270, %v1658, 0.0
        %1683 = vadd.xlane.f32.xlu0 %v1682
        %v1684 = vpop.xlane.xlu0 %1683
        %v1685 = vsel %vm1270, %v1659, 0.0
        %1686 = vadd.xlane.f32.xlu0 %v1685
        %v1687 = vpop.xlane.xlu0 %1686
        %v1688 = vsel %vm1270, %v1660, 0.0
        %1689 = vadd.xlane.f32.xlu0 %v1688
        %v1690 = vpop.xlane.xlu0 %1689
        %v1691 = vsel %vm1270, %v1661, 0.0
        %1692 = vadd.xlane.f32.xlu0 %v1691
        %v1693 = vpop.xlane.xlu0 %1692
        %v1694 = vsel %vm1270, %v1662, 0.0
        %1695 = vadd.xlane.f32.xlu0 %v1694
        %v1696 = vpop.xlane.xlu0 %1695
        %v1697 = vsel %vm1270, %v1663, 0.0
        %1698 = vadd.xlane.f32.xlu0 %v1697
        %v1699 = vpop.xlane.xlu0 %1698
        %s1700 = sld [smem:[#allocation2]]
        %v1701 = vstv %s1700
        %v1714 = vlaneseq
        %v1715 = vand.u32 %v1714, 127
        %v1716 = vlaneseq
        %v1717 = vshrl.u32 %v1716, 7
        %v1718 = vsub.s32 %v1715, %v1717
        %v1719 = vrot.slane %v1666, %v1718
        %v1720 = vadd.s32 %v1715, 4294967288
        %v1721 = vlaneseq
        %v1722 = vshrl.u32 %v1721, 7
        %v1723 = vsub.s32 %v1720, %v1722
        %v1724 = vrot.slane %v1669, %v1723
        %vm1725 = vcmask 130112
        %v1726 = vsel %vm1725, %v1724, %v1719
        %v1727 = vadd.s32 %v1715, 4294967280
        %v1728 = vlaneseq
        %v1729 = vshrl.u32 %v1728, 7
        %v1730 = vsub.s32 %v1727, %v1729
        %v1731 = vrot.slane %v1672, %v1730
        %vm1732 = vcmask 195712
        %v1733 = vsel %vm1732, %v1731, %v1726
        %v1734 = vadd.s32 %v1715, 4294967272
        %v1735 = vlaneseq
        %v1736 = vshrl.u32 %v1735, 7
        %v1737 = vsub.s32 %v1734, %v1736
        %v1738 = vrot.slane %v1675, %v1737
        %vm1739 = vcmask 261312
        %v1740 = vsel %vm1739, %v1738, %v1733
        %v1741 = vlaneseq
        %v1742 = vshrl.u32 %v1741, 7
        %v1743 = vsub.s32 %v1715, %v1742
        %v1744 = vrot.slane %v1678, %v1743
        %v1745 = vlaneseq
        %v1746 = vshrl.u32 %v1745, 7
        %v1747 = vsub.s32 %v1720, %v1746
        %v1748 = vrot.slane %v1681, %v1747
        %v1749 = vsel %vm1725, %v1748, %v1744
        %v1750 = vlaneseq
        %v1751 = vshrl.u32 %v1750, 7
        %v1752 = vsub.s32 %v1727, %v1751
        %v1753 = vrot.slane %v1684, %v1752
        %v1754 = vsel %vm1732, %v1753, %v1749
        %v1755 = vlaneseq
        %v1756 = vshrl.u32 %v1755, 7
        %v1757 = vsub.s32 %v1734, %v1756
        %v1758 = vrot.slane %v1687, %v1757
        %v1759 = vsel %vm1739, %v1758, %v1754
        %v1760 = vlaneseq
        %v1761 = vshrl.u32 %v1760, 7
        %v1762 = vsub.s32 %v1715, %v1761
        %v1763 = vrot.slane %v1690, %v1762
        %v1764 = vlaneseq
        %v1765 = vshrl.u32 %v1764, 7
        %v1766 = vsub.s32 %v1720, %v1765
        %v1767 = vrot.slane %v1693, %v1766
        %v1768 = vsel %vm1725, %v1767, %v1763
        %v1769 = vlaneseq
        %v1770 = vshrl.u32 %v1769, 7
        %v1771 = vsub.s32 %v1727, %v1770
        %v1772 = vrot.slane %v1696, %v1771
        %v1773 = vsel %vm1732, %v1772, %v1768
        %v1774 = vlaneseq
        %v1775 = vshrl.u32 %v1774, 7
        %v1776 = vsub.s32 %v1734, %v1775
        %v1777 = vrot.slane %v1699, %v1776
        %v1778 = vsel %vm1739, %v1777, %v1773
        %vm1779 = vcmask 1041409
        %v1780 = vsel %vm1779, %v1759, %v1740
        %vm1781 = vcmask 1042434
        %v1782 = vsel %vm1781, %v1778, %v1780
        %v1784 = vsel %vm1474, 1.0, 0
        %v1786 = vsel %vm1474, %v1782, 0
        %1788 = vmatprep.subr.mxu0 0.0
        %1789 = vmatpush1.xpose.msra.mxu0 %v1786
        %1790 = vmatprep.subr.mxu0 0.0
        %1791 = vmatpush1.xpose.msra.mxu0 0.0
        %1792 = vmatprep.subr.mxu0 0.0
        %1793 = vmatpush1.xpose.msra.mxu0 0.0
        %1794 = vmatprep.subr.mxu0 0.0
        %1795 = vmatpush1.xpose.msra.mxu0 0.0
        %1796 = vmatprep.subr.mxu0 0.0
        %1797 = vmatpush1.xpose.msra.mxu0 0.0
        %1798 = vmatprep.subr.mxu0 0.0
        %1799 = vmatpush1.xpose.msra.mxu0 0.0
        %1800 = vmatprep.subr.mxu0 0.0
        %1801 = vmatpush1.xpose.msra.mxu0 0.0
        %1802 = vmatprep.subr.mxu0 0.0
        %1803 = vmatpush1.xpose.msra.mxu0 0.0
        %1804 = vmatprep.subr.mxu0 0.0
        %1805 = vmatpush1.xpose.msra.mxu0 0.0
        %1806 = vmatprep.subr.mxu0 0.0
        %1807 = vmatpush1.xpose.msra.mxu0 0.0
        %1808 = vmatprep.subr.mxu0 0.0
        %1809 = vmatpush1.xpose.msra.mxu0 0.0
        %1810 = vmatprep.subr.mxu0 0.0
        %1811 = vmatpush1.xpose.msra.mxu0 0.0
        %1812 = vmatprep.subr.mxu0 0.0
        %1813 = vmatpush1.xpose.msra.mxu0 0.0
        %1814 = vmatprep.subr.mxu0 0.0
        %1815 = vmatpush1.xpose.msra.mxu0 0.0
        %1816 = vmatprep.subr.mxu0 0.0
        %1817 = vmatpush1.xpose.msra.mxu0 0.0
        %1818 = vmatprep.subr.mxu0 0.0
        %1819 = vmatpush1.xpose.msra.mxu0 0.0
        %1820 = vmatprep.subr.mxu0 0.0
        %1821 = vmatpush1.xpose.msra.mxu0 0.0
        %1822 = vmatprep.subr.mxu0 0.0
        %1823 = vmatpush1.xpose.msra.mxu0 0.0
        %1824 = vmatprep.subr.mxu0 0.0
        %1825 = vmatpush1.xpose.msra.mxu0 0.0
        %1826 = vmatprep.subr.mxu0 0.0
        %1827 = vmatpush1.xpose.msra.mxu0 0.0
        %1828 = vmatprep.subr.mxu0 0.0
        %1829 = vmatpush1.xpose.msra.mxu0 0.0
        %1830 = vmatprep.subr.mxu0 0.0
        %1831 = vmatpush1.xpose.msra.mxu0 0.0
        %1832 = vmatprep.subr.mxu0 0.0
        %1833 = vmatpush1.xpose.msra.mxu0 0.0
        %1834 = vmatprep.subr.mxu0 0.0
        %1835 = vmatpush1.xpose.msra.mxu0 0.0
        %1836 = vmatprep.subr.mxu0 0.0
        %1837 = vmatpush1.xpose.msra.mxu0 0.0
        %1838 = vmatprep.subr.mxu0 0.0
        %1839 = vmatpush1.xpose.msra.mxu0 0.0
        %1840 = vmatprep.subr.mxu0 0.0
        %1841 = vmatpush1.xpose.msra.mxu0 0.0
        %1842 = vmatprep.subr.mxu0 0.0
        %1843 = vmatpush1.xpose.msra.mxu0 0.0
        %1844 = vmatprep.subr.mxu0 0.0
        %1845 = vmatpush1.xpose.msra.mxu0 0.0
        %1846 = vmatprep.subr.mxu0 0.0
        %1847 = vmatpush1.xpose.msra.mxu0 0.0
        %1848 = vmatprep.subr.mxu0 0.0
        %1849 = vmatpush1.xpose.msra.mxu0 0.0
        %1850 = vmatprep.subr.mxu0 0.0
        %1851 = vmatpush1.xpose.msra.mxu0 0.0
        %1852 = vmatprep.mubr.f32.mxu0 0.0
        %1853 = vmatmul.mubr.f32.gmra.mrb[0].mxu0 %v1784
        %v1854 = vpop.f32.mrb[0].mxu0
        %v1855 = vadd.f32 %v1701, %v1854
        %v1856 = vpop.f32.mrb[0].mxu0
        %1857 = vdwg.mxu0
        %vm1858 = vcmask 16384
        %1859 = vst.msk [vmem:[%s450] sm:$0x1] %vm1858, %v1855
        %s1860 = sand.u32 %s319, 1
        %s1861 = scalar_lea.sflag [#allocation4], %s1860
        %s1862 = sand.u32 %s319, 1
        %s1863 = scalar_lea.vmem [#allocation3], %s1862
        // Predicated region
        $region73: #{tpu_custom_call.1} parent=71 // pred_check
          %p1864 = pneg %p329
        $region74: #{tpu_custom_call.1} parent=71 // pred_check_branch
          %1866 = sbr.rel (%p1864) target = $region76
        $region75: #{tpu_custom_call.1} parent=71 // pred_region
          %s1868 = ssub.s32 16, 16
          %1869 = vsyncadd %s1861, %s1868
          %s1870 = smul.addr %s28, 16
          %s1871 = scalar_lea.hbm %s13, %s1870
          %s1873 = sshll.u32 %s1863, 4
          %s1874 = int_to_ptr.vmem [resolvable:$true] %s1873
          %1876 = dma.vmem_to_hbm [thread:$0]  %s1874, 16, %s1871, %s1861
        $region76: #{tpu_custom_call.1} parent=71 // pred_fallthru
          _
      $region72: #{tpu_custom_call.1} parent=5 // pred_fallthru
        _
      %p1877 = scmp.le.s32.totalorder 2, %s23
      // Predicated region
      $region77: #{tpu_custom_call.1} parent=5 // pred_check
        %p1878 = pneg %p1877
      $region78: #{tpu_custom_call.1} parent=5 // pred_check_branch
        %1880 = sbr.rel (%p1878) target = $region80
      $region79: #{tpu_custom_call.1} parent=5 // pred_region
        %s1881 = ssub.s32 %s23, 2
        // Predicated region
        $region81: #{tpu_custom_call.1} parent=79 // pred_check
          %p1882 = pneg %p335
        $region82: #{tpu_custom_call.1} parent=79 // pred_check_branch
          %1884 = sbr.rel (%p1882) target = $region84
        $region83: #{tpu_custom_call.1} parent=79 // pred_region
          %s1885 = sand.u32 %s320, 1
          %s1886 = scalar_lea.sflag [#allocation4], %s1885
          %s1887 = sand.u32 %s320, 1
          %s1888 = scalar_lea.vmem [#allocation3], %s1887
          %1889 = dma.done %s1886, 16
        $region84: #{tpu_custom_call.1} parent=79 // pred_fallthru
          _
      $region80: #{tpu_custom_call.1} parent=5 // pred_fallthru
        _
    $region6: #{tpu_custom_call.1} parent=1 // loop_footer
      %s27 = sadd.s32 1, %s23
    $region7: #{tpu_custom_call.1} parent=1 // loop_footer_branch
      %22 = sbr.rel target = $region3
    $region8: #{tpu_custom_call.1} parent=1 // loop_exit
      _
    %1890 = vsyncpa [#allocation4], 1
    %s1891 = scalar_lea.sflag [#allocation4], 1
    %1892 = vsyncpa %s1891, 1

</llo_original>
